<compile_context>
chip_gen: v5e
topology: v5e:2x2
jax: 0.10.0
libtpu: 0.0.40
codegen_flags: <defaults>
</compile_context>

<pallas_src>
import functools

import jax
import jax.numpy as jnp
import numpy as np
from jax.experimental import pallas as pl
from jax.experimental.pallas import tpu as pltpu

EPS = 1e-5


# --------------------------------------------------------------------------
# Kernel 1: ConvTranspose2d(k=2, s=2) with BN1(up-part) folded + PReLU1,
# computed in phase-major form:  output row = (di*2 + dj)*Cout + oc,
# lane = i*W + j  (value of the full-res pixel (2i+di, 2j+dj)).
# Weights are bf16; accumulation and the bias / PReLU math are f32; the
# activated result is stored as bf16 (exactly what conv1 consumes).
# --------------------------------------------------------------------------
def _up_kernel(x_ref, w_ref, b_ref, a_ref, o_ref):
    # x_ref: (1, Cin, H*W) f32   w_ref: (4*Cout, Cin) bf16   b/a: (4*Cout, 1) f32
    z = jnp.dot(w_ref[...], x_ref[0].astype(jnp.bfloat16),
                preferred_element_type=jnp.float32) + b_ref[...]
    z = jnp.where(z >= 0.0, z, z * a_ref[...])
    o_ref[0] = z.astype(o_ref.dtype)


# --------------------------------------------------------------------------
# Kernel 2: fused  BN1+PReLU1 (skip part) -> concat (VMEM) -> conv3x3 (BN2
# folded) -> PReLU2 -> conv3x3 (BN3 folded) -> PReLU3.
# Layout: (C, H2*W2) with the flattened spatial axis on lanes.
# Each conv accumulates 9 MXU dots directly from lane-offset slices of a flat
# zero-padded VMEM scratch (no im2col patch buffer); W-border taps are killed
# by a precomputed lane mask, H-border taps by the zero pads.
# --------------------------------------------------------------------------
def _decoder_block_kernel(skip_ref, up_ref, s1_ref, t1_ref, a1_ref,
                          w1_ref, b1_ref, a2_ref, w2_ref, b2_ref, a3_ref, wm_ref,
                          o_ref,
                          cat1_ref, cat2_ref,
                          *, W2, pad):
    Cskip = skip_ref.shape[1]
    Cout = up_ref.shape[1]
    C1 = Cskip + Cout
    HW2 = skip_ref.shape[2]

    m_neg = wm_ref[pl.ds(0, 1), :]   # keep lanes where x-1 >= 0   (tap dw = -1)
    m_pos = wm_ref[pl.ds(1, 1), :]   # keep lanes where x+1 < W2   (tap dw = +1)

    def conv3x3(src_ref, w_r, b_r):
        # src_ref: (c, pad + HW2 + pad) flat padded image (zeros in the pads).
        # w_r: (9, Cout, c) bf16.  Accumulate one dot per tap; no patch buffer.
        acc = None
        t = 0
        for dh in (-1, 0, 1):
            for dw in (-1, 0, 1):
                v = src_ref[:, pl.ds(pad + dh * W2 + dw, HW2)]
                if dw == -1:
                    v = v * m_neg
                elif dw == 1:
                    v = v * m_pos
                d = jnp.dot(w_r[t], v.astype(jnp.bfloat16),
                            preferred_element_type=jnp.float32)
                acc = d if acc is None else acc + d
                t += 1
        return acc + b_r[...]

    # Zero the pad strips (small).  Re-done every grid step on purpose: a
    # program_id==0 guard is unsafe under a "parallel" grid on megacore parts
    # (the second core's private scratch would never get initialized).
    zpad1 = jnp.zeros((C1, pad), jnp.float32)
    cat1_ref[:, pl.ds(0, pad)] = zpad1
    cat1_ref[:, pl.ds(pad + HW2, pad)] = zpad1
    zpad2 = jnp.zeros((Cout, pad), jnp.float32)
    cat2_ref[:, pl.ds(0, pad)] = zpad2
    cat2_ref[:, pl.ds(pad + HW2, pad)] = zpad2

    # ---- BN1 + PReLU1 on skip, concat in VMEM (up part arrives pre-activated) ----
    s = skip_ref[0] * s1_ref[...] + t1_ref[...]
    s = jnp.where(s >= 0.0, s, s * a1_ref[...])
    cat1_ref[pl.ds(0, Cskip), pl.ds(pad, HW2)] = s
    cat1_ref[pl.ds(Cskip, Cout), pl.ds(pad, HW2)] = up_ref[0].astype(jnp.float32)

    # ---- conv1 (BN2 folded into w1/b1) + PReLU2 ----
    h = conv3x3(cat1_ref, w1_ref, b1_ref)                      # (Cout, HW2) f32
    h = jnp.where(h >= 0.0, h, h * a2_ref[...])

    # ---- conv2 (BN3 folded into w2/b2) + PReLU3 ----
    cat2_ref[:, pl.ds(pad, HW2)] = h
    g = conv3x3(cat2_ref, w2_ref, b2_ref)                      # (Cout, HW2) f32
    o_ref[0] = jnp.where(g >= 0.0, g, g * a3_ref[...])


# --------------------------------------------------------------------------
# Parameters (deterministic, synthetic; shapes follow the PyTorch module)
# --------------------------------------------------------------------------
def _fold_bn(gamma, beta, mean, var):
    scale = gamma / jnp.sqrt(var + EPS)
    bias = beta - mean * scale
    return scale, bias


def init_params(key, in_channels, skip_channels, out_channels):
    ks = jax.random.split(key, 9)
    C1 = out_channels + skip_channels
    p = {}
    # ConvTranspose2d weight in PyTorch layout (Cin, Cout, 2, 2)
    p["w_up"] = 0.1 * jax.random.normal(ks[0], (in_channels, out_channels, 2, 2), jnp.float32)
    p["b_up"] = 0.1 * jax.random.normal(ks[1], (out_channels,), jnp.float32)
    # Conv2d weights stored directly as HWIO
    p["w1"] = 0.1 * jax.random.normal(ks[2], (3, 3, C1, out_channels), jnp.float32)
    p["b1"] = 0.1 * jax.random.normal(ks[3], (out_channels,), jnp.float32)
    p["w2"] = 0.1 * jax.random.normal(ks[4], (3, 3, out_channels, out_channels), jnp.float32)
    p["b2"] = 0.1 * jax.random.normal(ks[5], (out_channels,), jnp.float32)

    def bn(k, c):
        k1, k2, k3, k4 = jax.random.split(k, 4)
        return dict(
            gamma=1.0 + 0.1 * jax.random.normal(k1, (c,), jnp.float32),
            beta=0.1 * jax.random.normal(k2, (c,), jnp.float32),
            mean=0.1 * jax.random.normal(k3, (c,), jnp.float32),
            var=1.0 + 0.1 * jnp.abs(jax.random.normal(k4, (c,), jnp.float32)),
        )

    p["bn1"] = bn(ks[6], C1)
    p["bn2"] = bn(ks[7], out_channels)
    p["bn3"] = bn(ks[8], out_channels)
    # PReLU default: single learnable alpha = 0.25
    p["a1"] = jnp.float32(0.25)
    p["a2"] = jnp.float32(0.25)
    p["a3"] = jnp.float32(0.25)
    return p


# --------------------------------------------------------------------------
# Wrapper (NCHW in / NCHW out, like the PyTorch module)
# --------------------------------------------------------------------------
def decoder_block_forward(params, x_nchw, skip_nchw):
    x = x_nchw.astype(jnp.float32)
    skip = skip_nchw.astype(jnp.float32)
    N, Cin, H, W = x.shape
    Cskip = skip.shape[1]
    Cout = params["w_up"].shape[1]
    H2, W2 = 2 * H, 2 * W
    C1 = Cskip + Cout
    HW, HW2 = H * W, H2 * W2
    pad = ((W2 + 1 + 127) // 128) * 128      # flat-scratch pad (>= W2+1, lane aligned)

    # ---- fold BN running stats into per-channel scale/bias ----
    s1, t1 = _fold_bn(**params["bn1"])       # (C1,)
    s2, t2 = _fold_bn(**params["bn2"])       # (Cout,)
    s3, t3 = _fold_bn(**params["bn3"])       # (Cout,)
    s1_up, t1_up = s1[Cskip:], t1[Cskip:]    # BN1 channels of the upsampled part
    s1_skip = s1[:Cskip][:, None]
    t1_skip = t1[:Cskip][:, None]

    # ---- ConvTranspose2d weights, phase-major rows, BN1(up) folded, bf16 ----
    # row = (di*2 + dj)*Cout + oc
    w_up2d = jnp.transpose(params["w_up"], (2, 3, 1, 0)).reshape(4 * Cout, Cin)
    w_upf = (w_up2d * jnp.tile(s1_up, 4)[:, None]).astype(jnp.bfloat16)
    b_upf = jnp.tile(params["b_up"] * s1_up + t1_up, 4)[:, None]
    a1_up = jnp.full((4 * Cout, 1), params["a1"], jnp.float32)

    x_flat = x.reshape(N, Cin, HW)
    up_phase = pl.pallas_call(
        _up_kernel,
        out_shape=jax.ShapeDtypeStruct((N, 4 * Cout, HW), jnp.bfloat16),
        grid=(N,),
        in_specs=[
            pl.BlockSpec((1, Cin, HW), lambda n: (n, 0, 0)),
            pl.BlockSpec((4 * Cout, Cin), lambda n: (0, 0)),
            pl.BlockSpec((4 * Cout, 1), lambda n: (0, 0)),
            pl.BlockSpec((4 * Cout, 1), lambda n: (0, 0)),
        ],
        out_specs=pl.BlockSpec((1, 4 * Cout, HW), lambda n: (n, 0, 0)),
        compiler_params=pltpu.CompilerParams(dimension_semantics=("parallel",)),
    )(x_flat, w_upf, b_upf, a1_up)

    # 2x2 phase -> full-res interleave (remaining wrapper-side data movement, bf16).
    up_full = (up_phase.reshape(N, 2, 2, Cout, H, W)
               .transpose(0, 3, 4, 1, 5, 2)
               .reshape(N, Cout, HW2))

    skip_flat = skip.reshape(N, Cskip, HW2)

    # ---- conv weight slabs (9, Cout, C) bf16, next BN folded in ----
    w1f = (jnp.transpose(params["w1"], (0, 1, 3, 2)).reshape(9, Cout, C1)
           * s2[None, :, None]).astype(jnp.bfloat16)
    b1f = (params["b1"] * s2 + t2)[:, None]
    w2f = (jnp.transpose(params["w2"], (0, 1, 3, 2)).reshape(9, Cout, Cout)
           * s3[None, :, None]).astype(jnp.bfloat16)
    b2f = (params["b2"] * s3 + t3)[:, None]

    a1_v = jnp.full((Cskip, 1), params["a1"], jnp.float32)
    a2_v = jnp.full((Cout, 1), params["a2"], jnp.float32)
    a3_v = jnp.full((Cout, 1), params["a3"], jnp.float32)

    # lane masks for the W-direction taps (row 0: dw=-1, row 1: dw=+1)
    xcol = jnp.arange(HW2, dtype=jnp.int32) % W2
    wmask = jnp.stack([(xcol >= 1).astype(jnp.float32),
                       (xcol <= W2 - 2).astype(jnp.float32)])   # (2, HW2)

    kern = functools.partial(_decoder_block_kernel, W2=W2, pad=pad)
    out_flat = pl.pallas_call(
        kern,
        out_shape=jax.ShapeDtypeStruct((N, Cout, HW2), jnp.float32),
        grid=(N,),
        in_specs=[
            pl.BlockSpec((1, Cskip, HW2), lambda n: (n, 0, 0)),
            pl.BlockSpec((1, Cout, HW2), lambda n: (n, 0, 0)),
            pl.BlockSpec((Cskip, 1), lambda n: (0, 0)),
            pl.BlockSpec((Cskip, 1), lambda n: (0, 0)),
            pl.BlockSpec((Cskip, 1), lambda n: (0, 0)),
            pl.BlockSpec((9, Cout, C1), lambda n: (0, 0, 0)),
            pl.BlockSpec((Cout, 1), lambda n: (0, 0)),
            pl.BlockSpec((Cout, 1), lambda n: (0, 0)),
            pl.BlockSpec((9, Cout, Cout), lambda n: (0, 0, 0)),
            pl.BlockSpec((Cout, 1), lambda n: (0, 0)),
            pl.BlockSpec((Cout, 1), lambda n: (0, 0)),
            pl.BlockSpec((2, HW2), lambda n: (0, 0)),
        ],
        out_specs=pl.BlockSpec((1, Cout, HW2), lambda n: (n, 0, 0)),
        scratch_shapes=[
            pltpu.VMEM((C1, HW2 + 2 * pad), jnp.float32),    # padded flat cat image
            pltpu.VMEM((Cout, HW2 + 2 * pad), jnp.float32),  # padded flat conv1 output
        ],
        compiler_params=pltpu.CompilerParams(
            dimension_semantics=("parallel",),
            vmem_limit_bytes=48 * 1024 * 1024),
    )(skip_flat, up_full, s1_skip, t1_skip, a1_v,
      w1f, b1f, a2_v, w2f, b2f, a3_v, wmask)

    return out_flat.reshape(N, Cout, H2, W2)     # NCHW


# --------------------------------------------------------------------------
# Pure-JAX reference (for correctness check, f32 end to end)
# --------------------------------------------------------------------------
def reference_forward(params, x_nchw, skip_nchw):
    x = jnp.transpose(x_nchw, (0, 2, 3, 1)).astype(jnp.float32)
    skip = jnp.transpose(skip_nchw, (0, 2, 3, 1)).astype(jnp.float32)
    N, H, W, _ = x.shape
    Cout = params["w_up"].shape[1]

    y = jnp.einsum("nijc,coab->nijoab", x, params["w_up"])
    up = y.transpose(0, 1, 4, 2, 5, 3).reshape(N, 2 * H, 2 * W, Cout) + params["b_up"]
    cat = jnp.concatenate([skip, up], axis=-1)

    def bn(h, d):
        return (h - d["mean"]) / jnp.sqrt(d["var"] + EPS) * d["gamma"] + d["beta"]

    def prelu(h, a):
        return jnp.where(h >= 0, h, a * h)

    def conv(h, w, b):
        return jax.lax.conv_general_dilated(
            h, w, window_strides=(1, 1), padding=((1, 1), (1, 1)),
            dimension_numbers=("NHWC", "HWIO", "NHWC")) + b

    h = prelu(bn(cat, params["bn1"]), params["a1"])
    h = conv(h, params["w1"], params["b1"])
    h = prelu(bn(h, params["bn2"]), params["a2"])
    h = conv(h, params["w2"], params["b2"])
    h = prelu(bn(h, params["bn3"]), params["a3"])
    return jnp.transpose(h, (0, 3, 1, 2))


if __name__ == "__main__":
    key = jax.random.PRNGKey(0)
    in_channels, skip_channels, out_channels = 8, 4, 4
    N, H, W = 2, 8, 8

    kx, ks, kp = jax.random.split(key, 3)
    x = jax.random.normal(kx, (N, in_channels, H, W), jnp.float32)              # NCHW
    skip = jax.random.normal(ks, (N, skip_channels, 2 * H, 2 * W), jnp.float32)  # NCHW
    params = init_params(kp, in_channels, skip_channels, out_channels)

    fwd = jax.jit(functools.partial(decoder_block_forward, params))
    out = jax.block_until_ready(fwd(x, skip))

    ref = reference_forward(params, x, skip)
    # Tolerance loosened vs the pure-f32 version: matmul operands are bf16
    # (f32 accumulation), per the performance review.
    np.testing.assert_allclose(np.asarray(out), np.asarray(ref), rtol=5e-2, atol=5e-2)
    print("KERNEL_OK")
</pallas_src>

<mosaic_0001>
module attributes {stable_mosaic.version = 11 : i64} {
  func.func @_up_kernel(%arg0: i32, %arg1: memref<1x8x64xf32, #tpu.memory_space<vmem>>, %arg2: memref<16x8xbf16, #tpu.memory_space<vmem>>, %arg3: memref<16x1xf32, #tpu.memory_space<vmem>>, %arg4: memref<16x1xf32, #tpu.memory_space<vmem>>, %arg5: memref<1x16x64xbf16, #tpu.memory_space<vmem>>) attributes {dimension_semantics = [#tpu.dimension_semantics<parallel>], iteration_bounds = array<i64: 2>, scalar_prefetch = 0 : i64, scratch_operands = 0 : i64, tpu.core_type = #tpu.core_type<tc>, window_params = [{transform_indices = @transform_0, window_bounds = array<i64: 1, 8, 64>}, {pipeline_mode = #tpu.pipeline_mode<synchronous>, transform_indices = @transform_1, window_bounds = array<i64: 16, 8>}, {pipeline_mode = #tpu.pipeline_mode<synchronous>, transform_indices = @transform_2, window_bounds = array<i64: 16, 1>}, {pipeline_mode = #tpu.pipeline_mode<synchronous>, transform_indices = @transform_3, window_bounds = array<i64: 16, 1>}, {transform_indices = @transform_4, window_bounds = array<i64: 1, 16, 64>}]} {
    %c0 = arith.constant 0 : index
    %c0_0 = arith.constant 0 : index
    %0 = vector.load %arg2[%c0, %c0_0] : memref<16x8xbf16, #tpu.memory_space<vmem>>, vector<16x8xbf16>
    %c0_1 = arith.constant 0 : index
    %c0_2 = arith.constant 0 : index
    %c0_3 = arith.constant 0 : index
    %1 = vector.load %arg1[%c0_1, %c0_2, %c0_3] : memref<1x8x64xf32, #tpu.memory_space<vmem>>, vector<1x8x64xf32>
    %2 = vector.shape_cast %1 : vector<1x8x64xf32> to vector<8x64xf32>
    %3 = arith.truncf %2 : vector<8x64xf32> to vector<8x64xbf16>
    %cst = arith.constant dense<0.000000e+00> : vector<16x64xf32>
    %4 = tpu.matmul %0, %3, %cst {dimension_numbers = #tpu.dot_dimension_numbers<[1], [0], [0], [1], [0, 0, 1, 1], [], []>} : vector<16x8xbf16>, vector<8x64xbf16>, vector<16x64xf32> -> vector<16x64xf32>
    %c0_4 = arith.constant 0 : index
    %c0_5 = arith.constant 0 : index
    %5 = vector.load %arg3[%c0_4, %c0_5] : memref<16x1xf32, #tpu.memory_space<vmem>>, vector<16x1xf32>
    %6 = vector.broadcast %5 : vector<16x1xf32> to vector<16x64xf32>
    %7 = arith.addf %4, %6 : vector<16x64xf32>
    %cst_6 = arith.constant 0.000000e+00 : f32
    %8 = vector.broadcast %cst_6 : f32 to vector<16x64xf32>
    %9 = arith.cmpf oge, %7, %8 : vector<16x64xf32>
    %c0_7 = arith.constant 0 : index
    %c0_8 = arith.constant 0 : index
    %10 = vector.load %arg4[%c0_7, %c0_8] : memref<16x1xf32, #tpu.memory_space<vmem>>, vector<16x1xf32>
    %11 = vector.broadcast %10 : vector<16x1xf32> to vector<16x64xf32>
    %12 = arith.mulf %7, %11 : vector<16x64xf32>
    %13 = arith.select %9, %7, %12 : vector<16x64xi1>, vector<16x64xf32>
    %14 = arith.truncf %13 : vector<16x64xf32> to vector<16x64xbf16>
    %c0_9 = arith.constant 0 : index
    %c0_10 = arith.constant 0 : index
    %c0_11 = arith.constant 0 : index
    %15 = vector.load %arg5[%c0_9, %c0_10, %c0_11] : memref<1x16x64xbf16, #tpu.memory_space<vmem>>, vector<1x16x64xbf16>
    %16 = vector.shape_cast %15 : vector<1x16x64xbf16> to vector<16x64xbf16>
    %17 = vector.shape_cast %14 : vector<16x64xbf16> to vector<1x16x64xbf16>
    tpu.vector_store %arg5[%c0_9, %c0_10, %c0_11], %17 {strides = array<i32>} : memref<1x16x64xbf16, #tpu.memory_space<vmem>>, vector<1x16x64xbf16>,
    return
  }
  func.func @transform_0(%arg0: i32) -> (i32, i32, i32) {
    %c0_i32 = arith.constant 0 : i32
    %c0_i32_0 = arith.constant 0 : i32
    %c0_i32_1 = arith.constant 0 : i32
    return %arg0, %c0_i32, %c0_i32_0 : i32, i32, i32
  }
  func.func @transform_1(%arg0: i32) -> (i32, i32) {
    %c0_i32 = arith.constant 0 : i32
    %c0_i32_0 = arith.constant 0 : i32
    %c0_i32_1 = arith.constant 0 : i32
    return %c0_i32, %c0_i32_0 : i32, i32
  }
  func.func @transform_2(%arg0: i32) -> (i32, i32) {
    %c0_i32 = arith.constant 0 : i32
    %c0_i32_0 = arith.constant 0 : i32
    %c0_i32_1 = arith.constant 0 : i32
    return %c0_i32, %c0_i32_0 : i32, i32
  }
  func.func @transform_3(%arg0: i32) -> (i32, i32) {
    %c0_i32 = arith.constant 0 : i32
    %c0_i32_0 = arith.constant 0 : i32
    %c0_i32_1 = arith.constant 0 : i32
    return %c0_i32, %c0_i32_0 : i32, i32
  }
  func.func @transform_4(%arg0: i32) -> (i32, i32, i32) {
    %c0_i32 = arith.constant 0 : i32
    %c0_i32_0 = arith.constant 0 : i32
    %c0_i32_1 = arith.constant 0 : i32
    return %arg0, %c0_i32, %c0_i32_0 : i32, i32, i32
  }
}

module attributes {stable_mosaic.version = 11 : i64} {
  func.func @_decoder_block_kernel(%arg0: i32, %arg1: memref<1x4x256xf32, #tpu.memory_space<vmem>>, %arg2: memref<1x4x256xbf16, #tpu.memory_space<vmem>>, %arg3: memref<4x1xf32, #tpu.memory_space<vmem>>, %arg4: memref<4x1xf32, #tpu.memory_space<vmem>>, %arg5: memref<4x1xf32, #tpu.memory_space<vmem>>, %arg6: memref<9x4x8xbf16, #tpu.memory_space<vmem>>, %arg7: memref<4x1xf32, #tpu.memory_space<vmem>>, %arg8: memref<4x1xf32, #tpu.memory_space<vmem>>, %arg9: memref<9x4x4xbf16, #tpu.memory_space<vmem>>, %arg10: memref<4x1xf32, #tpu.memory_space<vmem>>, %arg11: memref<4x1xf32, #tpu.memory_space<vmem>>, %arg12: memref<2x256xf32, #tpu.memory_space<vmem>>, %arg13: memref<1x4x256xf32, #tpu.memory_space<vmem>>, %arg14: memref<8x512xf32, #tpu.memory_space<vmem>>, %arg15: memref<4x512xf32, #tpu.memory_space<vmem>>) attributes {dimension_semantics = [#tpu.dimension_semantics<parallel>], iteration_bounds = array<i64: 2>, scalar_prefetch = 0 : i64, scratch_operands = 2 : i64, tpu.core_type = #tpu.core_type<tc>, window_params = [{transform_indices = @transform_0, window_bounds = array<i64: 1, 4, 256>}, {transform_indices = @transform_1, window_bounds = array<i64: 1, 4, 256>}, {pipeline_mode = #tpu.pipeline_mode<synchronous>, transform_indices = @transform_2, window_bounds = array<i64: 4, 1>}, {pipeline_mode = #tpu.pipeline_mode<synchronous>, transform_indices = @transform_3, window_bounds = array<i64: 4, 1>}, {pipeline_mode = #tpu.pipeline_mode<synchronous>, transform_indices = @transform_4, window_bounds = array<i64: 4, 1>}, {pipeline_mode = #tpu.pipeline_mode<synchronous>, transform_indices = @transform_5, window_bounds = array<i64: 9, 4, 8>}, {pipeline_mode = #tpu.pipeline_mode<synchronous>, transform_indices = @transform_6, window_bounds = array<i64: 4, 1>}, {pipeline_mode = #tpu.pipeline_mode<synchronous>, transform_indices = @transform_7, window_bounds = array<i64: 4, 1>}, {pipeline_mode = #tpu.pipeline_mode<synchronous>, transform_indices = @transform_8, window_bounds = array<i64: 9, 4, 4>}, {pipeline_mode = #tpu.pipeline_mode<synchronous>, transform_indices = @transform_9, window_bounds = array<i64: 4, 1>}, {pipeline_mode = #tpu.pipeline_mode<synchronous>, transform_indices = @transform_10, window_bounds = array<i64: 4, 1>}, {pipeline_mode = #tpu.pipeline_mode<synchronous>, transform_indices = @transform_11, window_bounds = array<i64: 2, 256>}, {transform_indices = @transform_12, window_bounds = array<i64: 1, 4, 256>}]} {
    %c0 = arith.constant 0 : index
    %c0_0 = arith.constant 0 : index
    %0 = vector.load %arg12[%c0, %c0_0] : memref<2x256xf32, #tpu.memory_space<vmem>>, vector<1x256xf32>
    %c1 = arith.constant 1 : index
    %c0_1 = arith.constant 0 : index
    %1 = vector.load %arg12[%c1, %c0_1] : memref<2x256xf32, #tpu.memory_space<vmem>>, vector<1x256xf32>
    %cst = arith.constant 0.000000e+00 : f32
    %2 = vector.broadcast %cst : f32 to vector<8x128xf32>
    %c0_2 = arith.constant 0 : index
    %c0_3 = arith.constant 0 : index
    %3 = vector.load %arg14[%c0_2, %c0_3] : memref<8x512xf32, #tpu.memory_space<vmem>>, vector<8x128xf32>
    tpu.vector_store %arg14[%c0_2, %c0_3], %2 {strides = array<i32>} : memref<8x512xf32, #tpu.memory_space<vmem>>, vector<8x128xf32>,
    %c0_4 = arith.constant 0 : index
    %c384 = arith.constant 384 : index
    %4 = vector.load %arg14[%c0_4, %c384] : memref<8x512xf32, #tpu.memory_space<vmem>>, vector<8x128xf32>
    tpu.vector_store %arg14[%c0_4, %c384], %2 {strides = array<i32>} : memref<8x512xf32, #tpu.memory_space<vmem>>, vector<8x128xf32>,
    %cst_5 = arith.constant 0.000000e+00 : f32
    %5 = vector.broadcast %cst_5 : f32 to vector<4x128xf32>
    %c0_6 = arith.constant 0 : index
    %c0_7 = arith.constant 0 : index
    %6 = vector.load %arg15[%c0_6, %c0_7] : memref<4x512xf32, #tpu.memory_space<vmem>>, vector<4x128xf32>
    tpu.vector_store %arg15[%c0_6, %c0_7], %5 {strides = array<i32>} : memref<4x512xf32, #tpu.memory_space<vmem>>, vector<4x128xf32>,
    %c0_8 = arith.constant 0 : index
    %c384_9 = arith.constant 384 : index
    %7 = vector.load %arg15[%c0_8, %c384_9] : memref<4x512xf32, #tpu.memory_space<vmem>>, vector<4x128xf32>
    tpu.vector_store %arg15[%c0_8, %c384_9], %5 {strides = array<i32>} : memref<4x512xf32, #tpu.memory_space<vmem>>, vector<4x128xf32>,
    %c0_10 = arith.constant 0 : index
    %c0_11 = arith.constant 0 : index
    %c0_12 = arith.constant 0 : index
    %8 = vector.load %arg1[%c0_10, %c0_11, %c0_12] : memref<1x4x256xf32, #tpu.memory_space<vmem>>, vector<1x4x256xf32>
    %9 = vector.shape_cast %8 : vector<1x4x256xf32> to vector<4x256xf32>
    %c0_13 = arith.constant 0 : index
    %c0_14 = arith.constant 0 : index
    %10 = vector.load %arg3[%c0_13, %c0_14] : memref<4x1xf32, #tpu.memory_space<vmem>>, vector<4x1xf32>
    %11 = vector.broadcast %10 : vector<4x1xf32> to vector<4x256xf32>
    %12 = arith.mulf %9, %11 : vector<4x256xf32>
    %c0_15 = arith.constant 0 : index
    %c0_16 = arith.constant 0 : index
    %13 = vector.load %arg4[%c0_15, %c0_16] : memref<4x1xf32, #tpu.memory_space<vmem>>, vector<4x1xf32>
    %14 = vector.broadcast %13 : vector<4x1xf32> to vector<4x256xf32>
    %15 = arith.addf %12, %14 : vector<4x256xf32>
    %cst_17 = arith.constant 0.000000e+00 : f32
    %16 = vector.broadcast %cst_17 : f32 to vector<4x256xf32>
    %17 = arith.cmpf oge, %15, %16 : vector<4x256xf32>
    %c0_18 = arith.constant 0 : index
    %c0_19 = arith.constant 0 : index
    %18 = vector.load %arg5[%c0_18, %c0_19] : memref<4x1xf32, #tpu.memory_space<vmem>>, vector<4x1xf32>
    %19 = vector.broadcast %18 : vector<4x1xf32> to vector<4x256xf32>
    %20 = arith.mulf %15, %19 : vector<4x256xf32>
    %21 = arith.select %17, %15, %20 : vector<4x256xi1>, vector<4x256xf32>
    %c0_20 = arith.constant 0 : index
    %c128 = arith.constant 128 : index
    %22 = vector.load %arg14[%c0_20, %c128] : memref<8x512xf32, #tpu.memory_space<vmem>>, vector<4x256xf32>
    tpu.vector_store %arg14[%c0_20, %c128], %21 {strides = array<i32>} : memref<8x512xf32, #tpu.memory_space<vmem>>, vector<4x256xf32>,
    %c0_21 = arith.constant 0 : index
    %c0_22 = arith.constant 0 : index
    %c0_23 = arith.constant 0 : index
    %23 = vector.load %arg2[%c0_21, %c0_22, %c0_23] : memref<1x4x256xbf16, #tpu.memory_space<vmem>>, vector<1x4x256xbf16>
    %24 = vector.shape_cast %23 : vector<1x4x256xbf16> to vector<4x256xbf16>
    %25 = arith.extf %24 : vector<4x256xbf16> to vector<4x256xf32>
    %c4 = arith.constant 4 : index
    %c128_24 = arith.constant 128 : index
    %26 = vector.load %arg14[%c4, %c128_24] : memref<8x512xf32, #tpu.memory_space<vmem>>, vector<4x256xf32>
    tpu.vector_store %arg14[%c4, %c128_24], %25 {strides = array<i32>} : memref<8x512xf32, #tpu.memory_space<vmem>>, vector<4x256xf32>,
    %c0_25 = arith.constant 0 : index
    %c111 = arith.constant 111 : index
    %27 = vector.load %arg14[%c0_25, %c111] : memref<8x512xf32, #tpu.memory_space<vmem>>, vector<8x256xf32>
    %28 = vector.broadcast %0 : vector<1x256xf32> to vector<8x256xf32>
    %29 = arith.mulf %27, %28 : vector<8x256xf32>
    %c0_26 = arith.constant 0 : index
    %c0_27 = arith.constant 0 : index
    %c0_28 = arith.constant 0 : index
    %30 = vector.load %arg6[%c0_26, %c0_27, %c0_28] : memref<9x4x8xbf16, #tpu.memory_space<vmem>>, vector<1x4x8xbf16>
    %31 = vector.shape_cast %30 : vector<1x4x8xbf16> to vector<4x8xbf16>
    %32 = arith.truncf %29 : vector<8x256xf32> to vector<8x256xbf16>
    %cst_29 = arith.constant dense<0.000000e+00> : vector<4x256xf32>
    %33 = tpu.matmul %31, %32, %cst_29 {dimension_numbers = #tpu.dot_dimension_numbers<[1], [0], [0], [1], [0, 0, 1, 1], [], []>} : vector<4x8xbf16>, vector<8x256xbf16>, vector<4x256xf32> -> vector<4x256xf32>
    %c0_30 = arith.constant 0 : index
    %c112 = arith.constant 112 : index
    %34 = vector.load %arg14[%c0_30, %c112] : memref<8x512xf32, #tpu.memory_space<vmem>>, vector<8x256xf32>
    %c1_31 = arith.constant 1 : index
    %c0_32 = arith.constant 0 : index
    %c0_33 = arith.constant 0 : index
    %35 = vector.load %arg6[%c1_31, %c0_32, %c0_33] : memref<9x4x8xbf16, #tpu.memory_space<vmem>>, vector<1x4x8xbf16>
    %36 = vector.shape_cast %35 : vector<1x4x8xbf16> to vector<4x8xbf16>
    %37 = arith.truncf %34 : vector<8x256xf32> to vector<8x256xbf16>
    %cst_34 = arith.constant dense<0.000000e+00> : vector<4x256xf32>
    %38 = tpu.matmul %36, %37, %cst_34 {dimension_numbers = #tpu.dot_dimension_numbers<[1], [0], [0], [1], [0, 0, 1, 1], [], []>} : vector<4x8xbf16>, vector<8x256xbf16>, vector<4x256xf32> -> vector<4x256xf32>
    %39 = arith.addf %33, %38 : vector<4x256xf32>
    %c0_35 = arith.constant 0 : index
    %c113 = arith.constant 113 : index
    %40 = vector.load %arg14[%c0_35, %c113] : memref<8x512xf32, #tpu.memory_space<vmem>>, vector<8x256xf32>
    %41 = vector.broadcast %1 : vector<1x256xf32> to vector<8x256xf32>
    %42 = arith.mulf %40, %41 : vector<8x256xf32>
    %c2 = arith.constant 2 : index
    %c0_36 = arith.constant 0 : index
    %c0_37 = arith.constant 0 : index
    %43 = vector.load %arg6[%c2, %c0_36, %c0_37] : memref<9x4x8xbf16, #tpu.memory_space<vmem>>, vector<1x4x8xbf16>
    %44 = vector.shape_cast %43 : vector<1x4x8xbf16> to vector<4x8xbf16>
    %45 = arith.truncf %42 : vector<8x256xf32> to vector<8x256xbf16>
    %cst_38 = arith.constant dense<0.000000e+00> : vector<4x256xf32>
    %46 = tpu.matmul %44, %45, %cst_38 {dimension_numbers = #tpu.dot_dimension_numbers<[1], [0], [0], [1], [0, 0, 1, 1], [], []>} : vector<4x8xbf16>, vector<8x256xbf16>, vector<4x256xf32> -> vector<4x256xf32>
    %47 = arith.addf %39, %46 : vector<4x256xf32>
    %c0_39 = arith.constant 0 : index
    %c127 = arith.constant 127 : index
    %48 = vector.load %arg14[%c0_39, %c127] : memref<8x512xf32, #tpu.memory_space<vmem>>, vector<8x256xf32>
    %49 = vector.broadcast %0 : vector<1x256xf32> to vector<8x256xf32>
    %50 = arith.mulf %48, %49 : vector<8x256xf32>
    %c3 = arith.constant 3 : index
    %c0_40 = arith.constant 0 : index
    %c0_41 = arith.constant 0 : index
    %51 = vector.load %arg6[%c3, %c0_40, %c0_41] : memref<9x4x8xbf16, #tpu.memory_space<vmem>>, vector<1x4x8xbf16>
    %52 = vector.shape_cast %51 : vector<1x4x8xbf16> to vector<4x8xbf16>
    %53 = arith.truncf %50 : vector<8x256xf32> to vector<8x256xbf16>
    %cst_42 = arith.constant dense<0.000000e+00> : vector<4x256xf32>
    %54 = tpu.matmul %52, %53, %cst_42 {dimension_numbers = #tpu.dot_dimension_numbers<[1], [0], [0], [1], [0, 0, 1, 1], [], []>} : vector<4x8xbf16>, vector<8x256xbf16>, vector<4x256xf32> -> vector<4x256xf32>
    %55 = arith.addf %47, %54 : vector<4x256xf32>
    %c0_43 = arith.constant 0 : index
    %c128_44 = arith.constant 128 : index
    %56 = vector.load %arg14[%c0_43, %c128_44] : memref<8x512xf32, #tpu.memory_space<vmem>>, vector<8x256xf32>
    %c4_45 = arith.constant 4 : index
    %c0_46 = arith.constant 0 : index
    %c0_47 = arith.constant 0 : index
    %57 = vector.load %arg6[%c4_45, %c0_46, %c0_47] : memref<9x4x8xbf16, #tpu.memory_space<vmem>>, vector<1x4x8xbf16>
    %58 = vector.shape_cast %57 : vector<1x4x8xbf16> to vector<4x8xbf16>
    %59 = arith.truncf %56 : vector<8x256xf32> to vector<8x256xbf16>
    %cst_48 = arith.constant dense<0.000000e+00> : vector<4x256xf32>
    %60 = tpu.matmul %58, %59, %cst_48 {dimension_numbers = #tpu.dot_dimension_numbers<[1], [0], [0], [1], [0, 0, 1, 1], [], []>} : vector<4x8xbf16>, vector<8x256xbf16>, vector<4x256xf32> -> vector<4x256xf32>
    %61 = arith.addf %55, %60 : vector<4x256xf32>
    %c0_49 = arith.constant 0 : index
    %c129 = arith.constant 129 : index
    %62 = vector.load %arg14[%c0_49, %c129] : memref<8x512xf32, #tpu.memory_space<vmem>>, vector<8x256xf32>
    %63 = vector.broadcast %1 : vector<1x256xf32> to vector<8x256xf32>
    %64 = arith.mulf %62, %63 : vector<8x256xf32>
    %c5 = arith.constant 5 : index
    %c0_50 = arith.constant 0 : index
    %c0_51 = arith.constant 0 : index
    %65 = vector.load %arg6[%c5, %c0_50, %c0_51] : memref<9x4x8xbf16, #tpu.memory_space<vmem>>, vector<1x4x8xbf16>
    %66 = vector.shape_cast %65 : vector<1x4x8xbf16> to vector<4x8xbf16>
    %67 = arith.truncf %64 : vector<8x256xf32> to vector<8x256xbf16>
    %cst_52 = arith.constant dense<0.000000e+00> : vector<4x256xf32>
    %68 = tpu.matmul %66, %67, %cst_52 {dimension_numbers = #tpu.dot_dimension_numbers<[1], [0], [0], [1], [0, 0, 1, 1], [], []>} : vector<4x8xbf16>, vector<8x256xbf16>, vector<4x256xf32> -> vector<4x256xf32>
    %69 = arith.addf %61, %68 : vector<4x256xf32>
    %c0_53 = arith.constant 0 : index
    %c143 = arith.constant 143 : index
    %70 = vector.load %arg14[%c0_53, %c143] : memref<8x512xf32, #tpu.memory_space<vmem>>, vector<8x256xf32>
    %71 = vector.broadcast %0 : vector<1x256xf32> to vector<8x256xf32>
    %72 = arith.mulf %70, %71 : vector<8x256xf32>
    %c6 = arith.constant 6 : index
    %c0_54 = arith.constant 0 : index
    %c0_55 = arith.constant 0 : index
    %73 = vector.load %arg6[%c6, %c0_54, %c0_55] : memref<9x4x8xbf16, #tpu.memory_space<vmem>>, vector<1x4x8xbf16>
    %74 = vector.shape_cast %73 : vector<1x4x8xbf16> to vector<4x8xbf16>
    %75 = arith.truncf %72 : vector<8x256xf32> to vector<8x256xbf16>
    %cst_56 = arith.constant dense<0.000000e+00> : vector<4x256xf32>
    %76 = tpu.matmul %74, %75, %cst_56 {dimension_numbers = #tpu.dot_dimension_numbers<[1], [0], [0], [1], [0, 0, 1, 1], [], []>} : vector<4x8xbf16>, vector<8x256xbf16>, vector<4x256xf32> -> vector<4x256xf32>
    %77 = arith.addf %69, %76 : vector<4x256xf32>
    %c0_57 = arith.constant 0 : index
    %c144 = arith.constant 144 : index
    %78 = vector.load %arg14[%c0_57, %c144] : memref<8x512xf32, #tpu.memory_space<vmem>>, vector<8x256xf32>
    %c7 = arith.constant 7 : index
    %c0_58 = arith.constant 0 : index
    %c0_59 = arith.constant 0 : index
    %79 = vector.load %arg6[%c7, %c0_58, %c0_59] : memref<9x4x8xbf16, #tpu.memory_space<vmem>>, vector<1x4x8xbf16>
    %80 = vector.shape_cast %79 : vector<1x4x8xbf16> to vector<4x8xbf16>
    %81 = arith.truncf %78 : vector<8x256xf32> to vector<8x256xbf16>
    %cst_60 = arith.constant dense<0.000000e+00> : vector<4x256xf32>
    %82 = tpu.matmul %80, %81, %cst_60 {dimension_numbers = #tpu.dot_dimension_numbers<[1], [0], [0], [1], [0, 0, 1, 1], [], []>} : vector<4x8xbf16>, vector<8x256xbf16>, vector<4x256xf32> -> vector<4x256xf32>
    %83 = arith.addf %77, %82 : vector<4x256xf32>
    %c0_61 = arith.constant 0 : index
    %c145 = arith.constant 145 : index
    %84 = vector.load %arg14[%c0_61, %c145] : memref<8x512xf32, #tpu.memory_space<vmem>>, vector<8x256xf32>
    %85 = vector.broadcast %1 : vector<1x256xf32> to vector<8x256xf32>
    %86 = arith.mulf %84, %85 : vector<8x256xf32>
    %c8 = arith.constant 8 : index
    %c0_62 = arith.constant 0 : index
    %c0_63 = arith.constant 0 : index
    %87 = vector.load %arg6[%c8, %c0_62, %c0_63] : memref<9x4x8xbf16, #tpu.memory_space<vmem>>, vector<1x4x8xbf16>
    %88 = vector.shape_cast %87 : vector<1x4x8xbf16> to vector<4x8xbf16>
    %89 = arith.truncf %86 : vector<8x256xf32> to vector<8x256xbf16>
    %cst_64 = arith.constant dense<0.000000e+00> : vector<4x256xf32>
    %90 = tpu.matmul %88, %89, %cst_64 {dimension_numbers = #tpu.dot_dimension_numbers<[1], [0], [0], [1], [0, 0, 1, 1], [], []>} : vector<4x8xbf16>, vector<8x256xbf16>, vector<4x256xf32> -> vector<4x256xf32>
    %91 = arith.addf %83, %90 : vector<4x256xf32>
    %c0_65 = arith.constant 0 : index
    %c0_66 = arith.constant 0 : index
    %92 = vector.load %arg7[%c0_65, %c0_66] : memref<4x1xf32, #tpu.memory_space<vmem>>, vector<4x1xf32>
    %93 = vector.broadcast %92 : vector<4x1xf32> to vector<4x256xf32>
    %94 = arith.addf %91, %93 : vector<4x256xf32>
    %cst_67 = arith.constant 0.000000e+00 : f32
    %95 = vector.broadcast %cst_67 : f32 to vector<4x256xf32>
    %96 = arith.cmpf oge, %94, %95 : vector<4x256xf32>
    %c0_68 = arith.constant 0 : index
    %c0_69 = arith.constant 0 : index
    %97 = vector.load %arg8[%c0_68, %c0_69] : memref<4x1xf32, #tpu.memory_space<vmem>>, vector<4x1xf32>
    %98 = vector.broadcast %97 : vector<4x1xf32> to vector<4x256xf32>
    %99 = arith.mulf %94, %98 : vector<4x256xf32>
    %100 = arith.select %96, %94, %99 : vector<4x256xi1>, vector<4x256xf32>
    %c0_70 = arith.constant 0 : index
    %c128_71 = arith.constant 128 : index
    %101 = vector.load %arg15[%c0_70, %c128_71] : memref<4x512xf32, #tpu.memory_space<vmem>>, vector<4x256xf32>
    tpu.vector_store %arg15[%c0_70, %c128_71], %100 {strides = array<i32>} : memref<4x512xf32, #tpu.memory_space<vmem>>, vector<4x256xf32>,
    %c0_72 = arith.constant 0 : index
    %c111_73 = arith.constant 111 : index
    %102 = vector.load %arg15[%c0_72, %c111_73] : memref<4x512xf32, #tpu.memory_space<vmem>>, vector<4x256xf32>
    %103 = vector.broadcast %0 : vector<1x256xf32> to vector<4x256xf32>
    %104 = arith.mulf %102, %103 : vector<4x256xf32>
    %c0_74 = arith.constant 0 : index
    %c0_75 = arith.constant 0 : index
    %c0_76 = arith.constant 0 : index
    %105 = vector.load %arg9[%c0_74, %c0_75, %c0_76] : memref<9x4x4xbf16, #tpu.memory_space<vmem>>, vector<1x4x4xbf16>
    %106 = vector.shape_cast %105 : vector<1x4x4xbf16> to vector<4x4xbf16>
    %107 = arith.truncf %104 : vector<4x256xf32> to vector<4x256xbf16>
    %cst_77 = arith.constant dense<0.000000e+00> : vector<4x256xf32>
    %108 = tpu.matmul %106, %107, %cst_77 {dimension_numbers = #tpu.dot_dimension_numbers<[1], [0], [0], [1], [0, 0, 1, 1], [], []>} : vector<4x4xbf16>, vector<4x256xbf16>, vector<4x256xf32> -> vector<4x256xf32>
    %c0_78 = arith.constant 0 : index
    %c112_79 = arith.constant 112 : index
    %109 = vector.load %arg15[%c0_78, %c112_79] : memref<4x512xf32, #tpu.memory_space<vmem>>, vector<4x256xf32>
    %c1_80 = arith.constant 1 : index
    %c0_81 = arith.constant 0 : index
    %c0_82 = arith.constant 0 : index
    %110 = vector.load %arg9[%c1_80, %c0_81, %c0_82] : memref<9x4x4xbf16, #tpu.memory_space<vmem>>, vector<1x4x4xbf16>
    %111 = vector.shape_cast %110 : vector<1x4x4xbf16> to vector<4x4xbf16>
    %112 = arith.truncf %109 : vector<4x256xf32> to vector<4x256xbf16>
    %cst_83 = arith.constant dense<0.000000e+00> : vector<4x256xf32>
    %113 = tpu.matmul %111, %112, %cst_83 {dimension_numbers = #tpu.dot_dimension_numbers<[1], [0], [0], [1], [0, 0, 1, 1], [], []>} : vector<4x4xbf16>, vector<4x256xbf16>, vector<4x256xf32> -> vector<4x256xf32>
    %114 = arith.addf %108, %113 : vector<4x256xf32>
    %c0_84 = arith.constant 0 : index
    %c113_85 = arith.constant 113 : index
    %115 = vector.load %arg15[%c0_84, %c113_85] : memref<4x512xf32, #tpu.memory_space<vmem>>, vector<4x256xf32>
    %116 = vector.broadcast %1 : vector<1x256xf32> to vector<4x256xf32>
    %117 = arith.mulf %115, %116 : vector<4x256xf32>
    %c2_86 = arith.constant 2 : index
    %c0_87 = arith.constant 0 : index
    %c0_88 = arith.constant 0 : index
    %118 = vector.load %arg9[%c2_86, %c0_87, %c0_88] : memref<9x4x4xbf16, #tpu.memory_space<vmem>>, vector<1x4x4xbf16>
    %119 = vector.shape_cast %118 : vector<1x4x4xbf16> to vector<4x4xbf16>
    %120 = arith.truncf %117 : vector<4x256xf32> to vector<4x256xbf16>
    %cst_89 = arith.constant dense<0.000000e+00> : vector<4x256xf32>
    %121 = tpu.matmul %119, %120, %cst_89 {dimension_numbers = #tpu.dot_dimension_numbers<[1], [0], [0], [1], [0, 0, 1, 1], [], []>} : vector<4x4xbf16>, vector<4x256xbf16>, vector<4x256xf32> -> vector<4x256xf32>
    %122 = arith.addf %114, %121 : vector<4x256xf32>
    %c0_90 = arith.constant 0 : index
    %c127_91 = arith.constant 127 : index
    %123 = vector.load %arg15[%c0_90, %c127_91] : memref<4x512xf32, #tpu.memory_space<vmem>>, vector<4x256xf32>
    %124 = vector.broadcast %0 : vector<1x256xf32> to vector<4x256xf32>
    %125 = arith.mulf %123, %124 : vector<4x256xf32>
    %c3_92 = arith.constant 3 : index
    %c0_93 = arith.constant 0 : index
    %c0_94 = arith.constant 0 : index
    %126 = vector.load %arg9[%c3_92, %c0_93, %c0_94] : memref<9x4x4xbf16, #tpu.memory_space<vmem>>, vector<1x4x4xbf16>
    %127 = vector.shape_cast %126 : vector<1x4x4xbf16> to vector<4x4xbf16>
    %128 = arith.truncf %125 : vector<4x256xf32> to vector<4x256xbf16>
    %cst_95 = arith.constant dense<0.000000e+00> : vector<4x256xf32>
    %129 = tpu.matmul %127, %128, %cst_95 {dimension_numbers = #tpu.dot_dimension_numbers<[1], [0], [0], [1], [0, 0, 1, 1], [], []>} : vector<4x4xbf16>, vector<4x256xbf16>, vector<4x256xf32> -> vector<4x256xf32>
    %130 = arith.addf %122, %129 : vector<4x256xf32>
    %c0_96 = arith.constant 0 : index
    %c128_97 = arith.constant 128 : index
    %131 = vector.load %arg15[%c0_96, %c128_97] : memref<4x512xf32, #tpu.memory_space<vmem>>, vector<4x256xf32>
    %c4_98 = arith.constant 4 : index
    %c0_99 = arith.constant 0 : index
    %c0_100 = arith.constant 0 : index
    %132 = vector.load %arg9[%c4_98, %c0_99, %c0_100] : memref<9x4x4xbf16, #tpu.memory_space<vmem>>, vector<1x4x4xbf16>
    %133 = vector.shape_cast %132 : vector<1x4x4xbf16> to vector<4x4xbf16>
    %134 = arith.truncf %131 : vector<4x256xf32> to vector<4x256xbf16>
    %cst_101 = arith.constant dense<0.000000e+00> : vector<4x256xf32>
    %135 = tpu.matmul %133, %134, %cst_101 {dimension_numbers = #tpu.dot_dimension_numbers<[1], [0], [0], [1], [0, 0, 1, 1], [], []>} : vector<4x4xbf16>, vector<4x256xbf16>, vector<4x256xf32> -> vector<4x256xf32>
    %136 = arith.addf %130, %135 : vector<4x256xf32>
    %c0_102 = arith.constant 0 : index
    %c129_103 = arith.constant 129 : index
    %137 = vector.load %arg15[%c0_102, %c129_103] : memref<4x512xf32, #tpu.memory_space<vmem>>, vector<4x256xf32>
    %138 = vector.broadcast %1 : vector<1x256xf32> to vector<4x256xf32>
    %139 = arith.mulf %137, %138 : vector<4x256xf32>
    %c5_104 = arith.constant 5 : index
    %c0_105 = arith.constant 0 : index
    %c0_106 = arith.constant 0 : index
    %140 = vector.load %arg9[%c5_104, %c0_105, %c0_106] : memref<9x4x4xbf16, #tpu.memory_space<vmem>>, vector<1x4x4xbf16>
    %141 = vector.shape_cast %140 : vector<1x4x4xbf16> to vector<4x4xbf16>
    %142 = arith.truncf %139 : vector<4x256xf32> to vector<4x256xbf16>
    %cst_107 = arith.constant dense<0.000000e+00> : vector<4x256xf32>
    %143 = tpu.matmul %141, %142, %cst_107 {dimension_numbers = #tpu.dot_dimension_numbers<[1], [0], [0], [1], [0, 0, 1, 1], [], []>} : vector<4x4xbf16>, vector<4x256xbf16>, vector<4x256xf32> -> vector<4x256xf32>
    %144 = arith.addf %136, %143 : vector<4x256xf32>
    %c0_108 = arith.constant 0 : index
    %c143_109 = arith.constant 143 : index
    %145 = vector.load %arg15[%c0_108, %c143_109] : memref<4x512xf32, #tpu.memory_space<vmem>>, vector<4x256xf32>
    %146 = vector.broadcast %0 : vector<1x256xf32> to vector<4x256xf32>
    %147 = arith.mulf %145, %146 : vector<4x256xf32>
    %c6_110 = arith.constant 6 : index
    %c0_111 = arith.constant 0 : index
    %c0_112 = arith.constant 0 : index
    %148 = vector.load %arg9[%c6_110, %c0_111, %c0_112] : memref<9x4x4xbf16, #tpu.memory_space<vmem>>, vector<1x4x4xbf16>
    %149 = vector.shape_cast %148 : vector<1x4x4xbf16> to vector<4x4xbf16>
    %150 = arith.truncf %147 : vector<4x256xf32> to vector<4x256xbf16>
    %cst_113 = arith.constant dense<0.000000e+00> : vector<4x256xf32>
    %151 = tpu.matmul %149, %150, %cst_113 {dimension_numbers = #tpu.dot_dimension_numbers<[1], [0], [0], [1], [0, 0, 1, 1], [], []>} : vector<4x4xbf16>, vector<4x256xbf16>, vector<4x256xf32> -> vector<4x256xf32>
    %152 = arith.addf %144, %151 : vector<4x256xf32>
    %c0_114 = arith.constant 0 : index
    %c144_115 = arith.constant 144 : index
    %153 = vector.load %arg15[%c0_114, %c144_115] : memref<4x512xf32, #tpu.memory_space<vmem>>, vector<4x256xf32>
    %c7_116 = arith.constant 7 : index
    %c0_117 = arith.constant 0 : index
    %c0_118 = arith.constant 0 : index
    %154 = vector.load %arg9[%c7_116, %c0_117, %c0_118] : memref<9x4x4xbf16, #tpu.memory_space<vmem>>, vector<1x4x4xbf16>
    %155 = vector.shape_cast %154 : vector<1x4x4xbf16> to vector<4x4xbf16>
    %156 = arith.truncf %153 : vector<4x256xf32> to vector<4x256xbf16>
    %cst_119 = arith.constant dense<0.000000e+00> : vector<4x256xf32>
    %157 = tpu.matmul %155, %156, %cst_119 {dimension_numbers = #tpu.dot_dimension_numbers<[1], [0], [0], [1], [0, 0, 1, 1], [], []>} : vector<4x4xbf16>, vector<4x256xbf16>, vector<4x256xf32> -> vector<4x256xf32>
    %158 = arith.addf %152, %157 : vector<4x256xf32>
    %c0_120 = arith.constant 0 : index
    %c145_121 = arith.constant 145 : index
    %159 = vector.load %arg15[%c0_120, %c145_121] : memref<4x512xf32, #tpu.memory_space<vmem>>, vector<4x256xf32>
    %160 = vector.broadcast %1 : vector<1x256xf32> to vector<4x256xf32>
    %161 = arith.mulf %159, %160 : vector<4x256xf32>
    %c8_122 = arith.constant 8 : index
    %c0_123 = arith.constant 0 : index
    %c0_124 = arith.constant 0 : index
    %162 = vector.load %arg9[%c8_122, %c0_123, %c0_124] : memref<9x4x4xbf16, #tpu.memory_space<vmem>>, vector<1x4x4xbf16>
    %163 = vector.shape_cast %162 : vector<1x4x4xbf16> to vector<4x4xbf16>
    %164 = arith.truncf %161 : vector<4x256xf32> to vector<4x256xbf16>
    %cst_125 = arith.constant dense<0.000000e+00> : vector<4x256xf32>
    %165 = tpu.matmul %163, %164, %cst_125 {dimension_numbers = #tpu.dot_dimension_numbers<[1], [0], [0], [1], [0, 0, 1, 1], [], []>} : vector<4x4xbf16>, vector<4x256xbf16>, vector<4x256xf32> -> vector<4x256xf32>
    %166 = arith.addf %158, %165 : vector<4x256xf32>
    %c0_126 = arith.constant 0 : index
    %c0_127 = arith.constant 0 : index
    %167 = vector.load %arg10[%c0_126, %c0_127] : memref<4x1xf32, #tpu.memory_space<vmem>>, vector<4x1xf32>
    %168 = vector.broadcast %167 : vector<4x1xf32> to vector<4x256xf32>
    %169 = arith.addf %166, %168 : vector<4x256xf32>
    %cst_128 = arith.constant 0.000000e+00 : f32
    %170 = vector.broadcast %cst_128 : f32 to vector<4x256xf32>
    %171 = arith.cmpf oge, %169, %170 : vector<4x256xf32>
    %c0_129 = arith.constant 0 : index
    %c0_130 = arith.constant 0 : index
    %172 = vector.load %arg11[%c0_129, %c0_130] : memref<4x1xf32, #tpu.memory_space<vmem>>, vector<4x1xf32>
    %173 = vector.broadcast %172 : vector<4x1xf32> to vector<4x256xf32>
    %174 = arith.mulf %169, %173 : vector<4x256xf32>
    %175 = arith.select %171, %169, %174 : vector<4x256xi1>, vector<4x256xf32>
    %c0_131 = arith.constant 0 : index
    %c0_132 = arith.constant 0 : index
    %c0_133 = arith.constant 0 : index
    %176 = vector.load %arg13[%c0_131, %c0_132, %c0_133] : memref<1x4x256xf32, #tpu.memory_space<vmem>>, vector<1x4x256xf32>
    %177 = vector.shape_cast %176 : vector<1x4x256xf32> to vector<4x256xf32>
    %178 = vector.shape_cast %175 : vector<4x256xf32> to vector<1x4x256xf32>
    tpu.vector_store %arg13[%c0_131, %c0_132, %c0_133], %178 {strides = array<i32>} : memref<1x4x256xf32, #tpu.memory_space<vmem>>, vector<1x4x256xf32>,
    return
  }
  func.func @transform_0(%arg0: i32) -> (i32, i32, i32) {
    %c0_i32 = arith.constant 0 : i32
    %c0_i32_0 = arith.constant 0 : i32
    %c0_i32_1 = arith.constant 0 : i32
    return %arg0, %c0_i32, %c0_i32_0 : i32, i32, i32
  }
  func.func @transform_1(%arg0: i32) -> (i32, i32, i32) {
    %c0_i32 = arith.constant 0 : i32
    %c0_i32_0 = arith.constant 0 : i32
    %c0_i32_1 = arith.constant 0 : i32
    return %arg0, %c0_i32, %c0_i32_0 : i32, i32, i32
  }
  func.func @transform_2(%arg0: i32) -> (i32, i32) {
    %c0_i32 = arith.constant 0 : i32
    %c0_i32_0 = arith.constant 0 : i32
    %c0_i32_1 = arith.constant 0 : i32
    return %c0_i32, %c0_i32_0 : i32, i32
  }
  func.func @transform_3(%arg0: i32) -> (i32, i32) {
    %c0_i32 = arith.constant 0 : i32
    %c0_i32_0 = arith.constant 0 : i32
    %c0_i32_1 = arith.constant 0 : i32
    return %c0_i32, %c0_i32_0 : i32, i32
  }
  func.func @transform_4(%arg0: i32) -> (i32, i32) {
    %c0_i32 = arith.constant 0 : i32
    %c0_i32_0 = arith.constant 0 : i32
    %c0_i32_1 = arith.constant 0 : i32
    return %c0_i32, %c0_i32_0 : i32, i32
  }
  func.func @transform_5(%arg0: i32) -> (i32, i32, i32) {
    %c0_i32 = arith.constant 0 : i32
    %c0_i32_0 = arith.constant 0 : i32
    %c0_i32_1 = arith.constant 0 : i32
    %c0_i32_2 = arith.constant 0 : i32
    return %c0_i32, %c0_i32_0, %c0_i32_1 : i32, i32, i32
  }
  func.func @transform_6(%arg0: i32) -> (i32, i32) {
    %c0_i32 = arith.constant 0 : i32
    %c0_i32_0 = arith.constant 0 : i32
    %c0_i32_1 = arith.constant 0 : i32
    return %c0_i32, %c0_i32_0 : i32, i32
  }
  func.func @transform_7(%arg0: i32) -> (i32, i32) {
    %c0_i32 = arith.constant 0 : i32
    %c0_i32_0 = arith.constant 0 : i32
    %c0_i32_1 = arith.constant 0 : i32
    return %c0_i32, %c0_i32_0 : i32, i32
  }
  func.func @transform_8(%arg0: i32) -> (i32, i32, i32) {
    %c0_i32 = arith.constant 0 : i32
    %c0_i32_0 = arith.constant 0 : i32
    %c0_i32_1 = arith.constant 0 : i32
    %c0_i32_2 = arith.constant 0 : i32
    return %c0_i32, %c0_i32_0, %c0_i32_1 : i32, i32, i32
  }
  func.func @transform_9(%arg0: i32) -> (i32, i32) {
    %c0_i32 = arith.constant 0 : i32
    %c0_i32_0 = arith.constant 0 : i32
    %c0_i32_1 = arith.constant 0 : i32
    return %c0_i32, %c0_i32_0 : i32, i32
  }
  func.func @transform_10(%arg0: i32) -> (i32, i32) {
    %c0_i32 = arith.constant 0 : i32
    %c0_i32_0 = arith.constant 0 : i32
    %c0_i32_1 = arith.constant 0 : i32
    return %c0_i32, %c0_i32_0 : i32, i32
  }
  func.func @transform_11(%arg0: i32) -> (i32, i32) {
    %c0_i32 = arith.constant 0 : i32
    %c0_i32_0 = arith.constant 0 : i32
    %c0_i32_1 = arith.constant 0 : i32
    return %c0_i32, %c0_i32_0 : i32, i32
  }
  func.func @transform_12(%arg0: i32) -> (i32, i32, i32) {
    %c0_i32 = arith.constant 0 : i32
    %c0_i32_0 = arith.constant 0 : i32
    %c0_i32_1 = arith.constant 0 : i32
    return %arg0, %c0_i32, %c0_i32_0 : i32, i32, i32
  }
}

</mosaic_0001>

<llo_original>
// kernel: tile.0
$region0: #{tile.0}
  %s0 = inlined_call_operand.vmem [shape: f32[4,4], index: 0, kind: input, shape index: {}]
  %s1 = inlined_call_operand.vmem [shape: f32[16,1], index: 1, kind: output, shape index: {}]
  $region1: #{tile.0} parent=0
    #allocation0 [shape = 'u8[4096]{0}', space=vmem, size = 0x1000, scoped, tag = 'scoped mem for input reshape']
    %s3 = ssub.s32 16, 1
    %v4 = vld [vmem:[%s0] sm:%s3]
    %5 = vst [vmem:[#allocation0] sm:%s3] %v4
    %v6 = vld [vmem:[#allocation0] sm:$0xf]
    %vm7 = vcmask 7168
    %8 = vst.msk [vmem:[%s1] ss:$4 sm:$0xf] %vm7, %v6
    %v9 = vld [vmem:[#allocation0] sm:$0xf]
    %10 = vrot.lane.b32.xlu0 %v9, 127
    %v11 = vpop.permute.xlu0 %10
    %vm12 = vcmask 7168
    %s13 = scalar_lea.vmem %s1, 1
    %14 = vst.msk [vmem:[%s13] ss:$4 sm:$0xf] %vm12, %v11
    %v15 = vld [vmem:[#allocation0] sm:$0xf]
    %16 = vrot.lane.b32.xlu0 %v15, 126
    %v17 = vpop.permute.xlu0 %16
    %vm18 = vcmask 7168
    %s19 = scalar_lea.vmem %s1, 2
    %20 = vst.msk [vmem:[%s19] ss:$4 sm:$0xf] %vm18, %v17
    %v21 = vld [vmem:[#allocation0] sm:$0xf]
    %22 = vrot.lane.b32.xlu0 %v21, 125
    %v23 = vpop.permute.xlu0 %22
    %vm24 = vcmask 7168
    %s25 = scalar_lea.vmem %s1, 3
    %26 = vst.msk [vmem:[%s25] ss:$4 sm:$0xf] %vm24, %v23

// kernel: mul.10
$region0: #{mul.10}
  %s0 = inlined_call_operand.vmem [shape: f32[4,4], index: 0, kind: input, shape index: {}]
  %s1 = inlined_call_operand.vmem [shape: f32[16], index: 1, kind: output, shape index: {}]
  $region1: #{mul.10} parent=0
    #allocation0 [shape = 'u8[4096]{0}', space=vmem, size = 0x1000, scoped, tag = 'scoped mem for output reshape']
    #allocation1 [shape = 'u8[4096]{0}', space=vmem, size = 0x1000, scoped, tag = 'scoped mem for input reshape']
    %s3 = ssub.s32 16, 1
    %v4 = vld [vmem:[%s0] sm:%s3]
    %5 = vst [vmem:[#allocation1] sm:%s3] %v4
    %v6 = vld [vmem:[#allocation1] sm:$0x1]
    %vm7 = vcmask 31744
    %8 = vst.msk [vmem:[#allocation0] sm:$0x1] %vm7, %v6
    %s9 = scalar_lea.vmem [#allocation1], 3
    %v10 = vld [vmem:[%s9] sm:$0x1]
    %11 = vrot.lane.b32.xlu0 %v10, 12
    %v12 = vpop.permute.xlu0 %11
    %vm13 = vcmask 130144
    %14 = vst.msk [vmem:[#allocation0] sm:$0x1] %vm13, %v12
    %s15 = scalar_lea.vmem [#allocation1], 2
    %v16 = vld [vmem:[%s15] sm:$0x1]
    %17 = vrot.lane.b32.xlu0 %v16, 8
    %v18 = vpop.permute.xlu0 %17
    %vm19 = vcmask 97344
    %20 = vst.msk [vmem:[#allocation0] sm:$0x1] %vm19, %v18
    %s21 = scalar_lea.vmem [#allocation1], 1
    %v22 = vld [vmem:[%s21] sm:$0x1]
    %23 = vrot.lane.b32.xlu0 %v22, 4
    %v24 = vpop.permute.xlu0 %23
    %vm25 = vcmask 64544
    %26 = vst.msk [vmem:[#allocation0] sm:$0x1] %vm25, %v24
    %s28 = ssub.s32 2, 1
    %v29 = vld [vmem:[#allocation0] sm:%s28]
    %s31 = ssub.s32 2, 1
    %32 = vst [vmem:[%s1] sm:%s31] %v29

// kernel: tile.14
$region0: #{tile.14}
  #allocation0 [shape = 's32[1]{0}', space=sflag, size = 0x4, scoped, tag = 'scoped memory for tile.14']
  %s0 = inlined_call_operand.vmem [shape: f32[4], index: 0, kind: input, shape index: {}]
  %s1 = inlined_call_operand.vmem [shape: f32[4,4], index: 1, kind: output, shape index: {}]
  // Predicated region
  $region2: #{tile.14} parent=0 // pred_check
    _
  $region3: #{tile.14} parent=0 // pred_check_branch
    %3 = sbr.rel (0) target = $region5
  $region4: #{tile.14} parent=0 // pred_region
    _
  $region5: #{tile.14} parent=0 // pred_fallthru
    _
  %v4 = vld [vmem:[%s0] ss:$0 sm:$0xff]
  %5 = vst [vmem:[%s1] sm:$0xf] %v4

// kernel: decoder_block_forward.2
$region0: #{decoder_block_forward.2}
  #allocation0 [shape = 'u32[]', space=smem, size = 0x4, offset = 0x4, fixed_abs, tag = 'smem constant byte address 0x4 - core index']
  #allocation1 [shape = 'u32[72,128]{1,0:T(1,128)}', space=vmem, size = 0x9000, scoped, tag = 'internal scratch']
  %s0 = inlined_call_operand.vmem [shape: f32[2,8,64], index: 0, kind: input, shape index: {}]
  %s1 = inlined_call_operand.vmem [shape: bf16[16,8], index: 1, kind: input, shape index: {}]
  %s2 = inlined_call_operand.vmem [shape: f32[16,1], index: 2, kind: input, shape index: {}]
  %s3 = inlined_call_operand.vmem [shape: f32[16,1], index: 3, kind: input, shape index: {}]
  %s4 = inlined_call_operand.vmem [shape: bf16[2,16,64], index: 4, kind: output, shape index: {}]
  %s5 = sld [smem:[#allocation0]]
  $region49: #{decoder_block_forward.2} parent=0
    _
  %s7 = ssub.s32 1, %s5
  %s8 = scalar_select 0, %s7, %s5
  loop: start=0, step=1, limit=4
  $region2: #{decoder_block_forward.2} parent=0 // loop_pre_header
    _
  $region3: #{decoder_block_forward.2} parent=0 // loop_header
    %s10 = sphi 0, %s14
    %p11 = scmp.ge.s32.totalorder %s10, 4
    %s20 = sphi 0, %s22
    %s23 = sphi 0, %s20
    %s24 = sphi 0, %s23
    %s40 = sphi 0, %s24
    %s44 = sphi 0, %s44
    %s46 = sphi 0, %s44
    %s47 = sphi 0, %s46
    %s61 = sphi 0, %s47
    %s65 = sphi 0, %s65
    %s67 = sphi 0, %s65
    %s68 = sphi 0, %s67
    %s82 = sphi 0, %s68
    %s86 = sphi 0, %s86
    %s88 = sphi 0, %s86
    %s89 = sphi 0, %s88
    %s103 = sphi 0, %s89
    %s109 = sphi 0, %s111
    %s112 = sphi 0, %s109
    %s113 = sphi 0, %s112
    %s129 = sphi 0, %s113
  $region4: #{decoder_block_forward.2} parent=0 // loop_header_branch
    %13 = sbr.rel (%p11) target = $region8
  $region5: #{decoder_block_forward.2} parent=0 // loop_body
    %s15 = ssub.s32 %s10, 1
    %s16 = ssub.s32 %s10, 2
    %s17 = sadd.s32 %s10, 1
    %s18 = ssub.s32 %s10, %s17
    %p19 = scmp.eq.s32.totalorder %s18, 0
    %s21 = sadd.s32 %s20, 1
    %s22 = scalar_select %p19, %s20, %s21
    %p25 = pneg %p19
    %p26 = scmp.eq.s32.totalorder %s10, 1
    %p27 = por %p25, %p26
    %p28 = scmp.ne.s32.totalorder %s20, %s23
    %p29 = scmp.eq.s32.totalorder %s10, 0
    %p30 = por %p28, %p29
    %p31 = scmp.ne.s32.totalorder %s20, %s23
    %p32 = scmp.eq.s32.totalorder %s15, 1
    %p33 = por %p31, %p32
    %p34 = scmp.ne.s32.totalorder %s23, %s24
    %p35 = scmp.eq.s32.totalorder %s15, 0
    %p36 = por %p34, %p35
    %p37 = scmp.ne.s32.totalorder %s23, %s24
    %p38 = scmp.eq.s32.totalorder %s16, 1
    %p39 = por %p37, %p38
    %p41 = scmp.ne.s32.totalorder %s24, %s40
    %p42 = scmp.eq.s32.totalorder %s16, 0
    %p43 = por %p41, %p42
    %s45 = sadd.s32 %s44, 1
    %p48 = scmp.eq.s32.totalorder %s10, 1
    %p49 = scmp.ne.s32.totalorder %s44, %s46
    %p50 = scmp.eq.s32.totalorder %s10, 0
    %p51 = por %p49, %p50
    %p52 = scmp.ne.s32.totalorder %s44, %s46
    %p53 = scmp.eq.s32.totalorder %s15, 1
    %p54 = por %p52, %p53
    %p55 = scmp.ne.s32.totalorder %s46, %s47
    %p56 = scmp.eq.s32.totalorder %s15, 0
    %p57 = por %p55, %p56
    %p58 = scmp.ne.s32.totalorder %s46, %s47
    %p59 = scmp.eq.s32.totalorder %s16, 1
    %p60 = por %p58, %p59
    %p62 = scmp.ne.s32.totalorder %s47, %s61
    %p63 = scmp.eq.s32.totalorder %s16, 0
    %p64 = por %p62, %p63
    %s66 = sadd.s32 %s65, 1
    %p69 = scmp.eq.s32.totalorder %s10, 1
    %p70 = scmp.ne.s32.totalorder %s65, %s67
    %p71 = scmp.eq.s32.totalorder %s10, 0
    %p72 = por %p70, %p71
    %p73 = scmp.ne.s32.totalorder %s65, %s67
    %p74 = scmp.eq.s32.totalorder %s15, 1
    %p75 = por %p73, %p74
    %p76 = scmp.ne.s32.totalorder %s67, %s68
    %p77 = scmp.eq.s32.totalorder %s15, 0
    %p78 = por %p76, %p77
    %p79 = scmp.ne.s32.totalorder %s67, %s68
    %p80 = scmp.eq.s32.totalorder %s16, 1
    %p81 = por %p79, %p80
    %p83 = scmp.ne.s32.totalorder %s68, %s82
    %p84 = scmp.eq.s32.totalorder %s16, 0
    %p85 = por %p83, %p84
    %s87 = sadd.s32 %s86, 1
    %p90 = scmp.eq.s32.totalorder %s10, 1
    %p91 = scmp.ne.s32.totalorder %s86, %s88
    %p92 = scmp.eq.s32.totalorder %s10, 0
    %p93 = por %p91, %p92
    %p94 = scmp.ne.s32.totalorder %s86, %s88
    %p95 = scmp.eq.s32.totalorder %s15, 1
    %p96 = por %p94, %p95
    %p97 = scmp.ne.s32.totalorder %s88, %s89
    %p98 = scmp.eq.s32.totalorder %s15, 0
    %p99 = por %p97, %p98
    %p100 = scmp.ne.s32.totalorder %s88, %s89
    %p101 = scmp.eq.s32.totalorder %s16, 1
    %p102 = por %p100, %p101
    %p104 = scmp.ne.s32.totalorder %s89, %s103
    %p105 = scmp.eq.s32.totalorder %s16, 0
    %p106 = por %p104, %p105
    %s107 = ssub.s32 %s10, %s17
    %p108 = scmp.eq.s32.totalorder %s107, 0
    %s110 = sadd.s32 %s109, 1
    %s111 = scalar_select %p108, %s109, %s110
    %p114 = pneg %p108
    %p115 = scmp.eq.s32.totalorder %s10, 1
    %p116 = por %p114, %p115
    %p117 = scmp.ne.s32.totalorder %s109, %s112
    %p118 = scmp.eq.s32.totalorder %s10, 0
    %p119 = por %p117, %p118
    %p120 = scmp.ne.s32.totalorder %s109, %s112
    %p121 = scmp.eq.s32.totalorder %s15, 1
    %p122 = por %p120, %p121
    %p123 = scmp.ne.s32.totalorder %s112, %s113
    %p124 = scmp.eq.s32.totalorder %s15, 0
    %p125 = por %p123, %p124
    %p126 = scmp.ne.s32.totalorder %s112, %s113
    %p127 = scmp.eq.s32.totalorder %s16, 1
    %p128 = por %p126, %p127
    %p130 = scmp.ne.s32.totalorder %s113, %s129
    %p131 = scmp.eq.s32.totalorder %s16, 0
    %p132 = por %p130, %p131
    %p133 = scmp.le.s32.totalorder 1, %s10
    %p134 = scmp.lt.s32.totalorder %s10, 3
    %p135 = pnand %p133, %p134
    %p136 = pneg %p135
    // Predicated region
    $region9: #{decoder_block_forward.2} parent=5 // pred_check
      _
    $region10: #{decoder_block_forward.2} parent=5 // pred_check_branch
      %138 = sbr.rel (%p135) target = $region12
    $region11: #{decoder_block_forward.2} parent=5 // pred_region
      %s139 = ssub.s32 %s10, 1
      // Predicated region
      $region13: #{decoder_block_forward.2} parent=11 // pred_check
        %p140 = pneg %p57
      $region14: #{decoder_block_forward.2} parent=11 // pred_check_branch
        %142 = sbr.rel (%p140) target = $region16
      $region15: #{decoder_block_forward.2} parent=11 // pred_region
        _
      $region16: #{decoder_block_forward.2} parent=11 // pred_fallthru
        _
      // Predicated region
      $region17: #{decoder_block_forward.2} parent=11 // pred_check
        %p143 = pneg %p78
      $region18: #{decoder_block_forward.2} parent=11 // pred_check_branch
        %145 = sbr.rel (%p143) target = $region20
      $region19: #{decoder_block_forward.2} parent=11 // pred_region
        _
      $region20: #{decoder_block_forward.2} parent=11 // pred_fallthru
        _
      // Predicated region
      $region21: #{decoder_block_forward.2} parent=11 // pred_check
        %p146 = pneg %p99
      $region22: #{decoder_block_forward.2} parent=11 // pred_check_branch
        %148 = sbr.rel (%p146) target = $region24
      $region23: #{decoder_block_forward.2} parent=11 // pred_region
        _
      $region24: #{decoder_block_forward.2} parent=11 // pred_fallthru
        _
    $region12: #{decoder_block_forward.2} parent=5 // pred_fallthru
      _
    %p149 = scmp.lt.s32.totalorder %s10, 2
    // Predicated region
    $region25: #{decoder_block_forward.2} parent=5 // pred_check
      %p150 = pneg %p149
    $region26: #{decoder_block_forward.2} parent=5 // pred_check_branch
      %152 = sbr.rel (%p150) target = $region28
    $region27: #{decoder_block_forward.2} parent=5 // pred_region
      // Predicated region
      $region29: #{decoder_block_forward.2} parent=27 // pred_check
        %p153 = pneg %p30
      $region30: #{decoder_block_forward.2} parent=27 // pred_check_branch
        %155 = sbr.rel (%p153) target = $region32
      $region31: #{decoder_block_forward.2} parent=27 // pred_region
        %p156 = scmp.lt.s32.totalorder %s10, 1
        %s157 = scalar_select %p156, %s10, 1
        %s158 = smul.addr %s157, 8
        %s159 = scalar_lea.vmem %s0, %s158
      $region32: #{decoder_block_forward.2} parent=27 // pred_fallthru
        _
    $region28: #{decoder_block_forward.2} parent=5 // pred_fallthru
      _
    %p160 = scmp.le.s32.totalorder 1, %s10
    %p161 = scmp.lt.s32.totalorder %s10, 3
    %p162 = pnand %p160, %p161
    %p163 = pneg %p162
    // Predicated region
    $region33: #{decoder_block_forward.2} parent=5 // pred_check
      _
    $region34: #{decoder_block_forward.2} parent=5 // pred_check_branch
      %165 = sbr.rel (%p162) target = $region36
    $region35: #{decoder_block_forward.2} parent=5 // pred_region
      %s166 = ssub.s32 %s10, 1
      %p167 = scmp.lt.s32.totalorder %s15, 1
      %s168 = scalar_select %p167, %s15, 1
      %s169 = smul.addr %s168, 8
      %s170 = scalar_lea.vmem %s0, %s169
      %p171 = pneg %p36
      %p172 = pneg %p33
      %p173 = pneg %p57
      %p174 = pneg %p54
      %p175 = pneg %p78
      %p176 = pneg %p75
      %p177 = pneg %p99
      %p178 = pneg %p96
      %p179 = pneg %p125
      %p180 = pneg %p122
      %p181 = scmp.lt.s32.totalorder %s15, 1
      %s182 = scalar_select %p181, %s15, 1
      %s183 = smul.addr %s182, 2
      %s184 = smul.addr %s183, 4
      %s185 = scalar_lea.vmem %s4, %s184
      %p186 = scmp.lt.s32.totalorder %s15, 1
      %s187 = scalar_select %p186, %s15, 1
      %s188 = smul.addr %s187, 8
      %s189 = scalar_lea.vmem %s0, %s188
      %p190 = scmp.lt.s32.totalorder %s15, 1
      %s191 = scalar_select %p190, %s15, 1
      %s192 = smul.addr %s191, 2
      %s193 = smul.addr %s192, 4
      %s194 = scalar_lea.vmem %s4, %s193
      %v196 = vld [vmem:[%s1] sm:$0xf]
      %v197 = vld [vmem:[%s1 + $0x4] sm:$0xf]
      %v198 = vld [vmem:[%s189] sm:$0xff]
      %v199 = vpack.c.bf16 %v198, %v198
      %v200 = vld [vmem:[%s2] sm:$0xff]
      %v201 = vld [vmem:[%s2 + $0x8] sm:$0xff]
      %203 = vset.pattern.permute.xlu0 0
      %204 = vperm.xlu0 %203, %v200
      %v205 = vpop.permute.xlu0 %204
      %208 = vset.pattern.permute.xlu0 0
      %209 = vperm.xlu0 %208, %v201
      %v210 = vpop.permute.xlu0 %209
      %v214 = vunpack.c.l.b16 %v196
      %v215 = vunpack.c.l.b16 %v197
      %v216 = vpack.c.b16 %v215, %v214
      %vm217 = vcmask 64512
      %v219 = vsel %vm217, %v216, 0
      %vm221 = vcmask 1043456
      %v223 = vsel %vm221, %v199, 0
      %225 = vmatpush.bf16.msra.mxu0 0
      %226 = vmatpush.bf16.msra.mxu0 0
      %227 = vmatpush.bf16.msra.mxu0 0
      %228 = vmatpush.bf16.msra.mxu0 0
      %229 = vmatpush.bf16.msra.mxu0 0
      %230 = vmatpush.bf16.msra.mxu0 0
      %231 = vmatpush.bf16.msra.mxu0 0
      %232 = vmatpush.bf16.msra.mxu0 %v223
      %233 = vmatmul.bf16.gmra.mxu0 %v219
      %v234 = vpop.f32.mrf.mxu0
      %v235 = vadd.f32 %v205, %v234
      %v236 = vpop.f32.mrf.mxu0
      %v237 = vadd.f32 %v210, %v236
      %238 = vdwg.mxu0
      %vm239 = vcmp.ge.f32.partialorder %v235, 0.0
      %vm240 = vcmp.ge.f32.partialorder %v237, 0.0
      %v241 = vld [vmem:[%s3] sm:$0xff]
      %v242 = vld [vmem:[%s3 + $0x8] sm:$0xff]
      %244 = vset.pattern.permute.xlu0 0
      %245 = vperm.xlu0 %244, %v241
      %v246 = vpop.permute.xlu0 %245
      %249 = vset.pattern.permute.xlu0 0
      %250 = vperm.xlu0 %249, %v242
      %v251 = vpop.permute.xlu0 %250
      %v253 = vmul.f32 %v235, %v246
      %v254 = vmul.f32 %v237, %v251
      %v255 = vsel %vm239, %v235, %v253
      %v256 = vsel %vm240, %v237, %v254
      %v257 = vpack.c.bf16 %v255, %v255
      %v258 = vpack.c.bf16 %v256, %v256
      %vm259 = vcmask 519168
      %260 = vst.msk [vmem:[%s194] sm:$0xf] %vm259, %v257
      %261 = vst.msk [vmem:[%s194 + $0x4] sm:$0xf] %vm259, %v258
      %p262 = scmp.lt.s32.totalorder %s15, 1
      %s263 = scalar_select %p262, %s15, 1
      %s264 = smul.addr %s263, 2
      %s265 = smul.addr %s264, 4
      %s266 = scalar_lea.vmem %s4, %s265
      // Predicated region
      $region37: #{decoder_block_forward.2} parent=35 // pred_check
        %p267 = pneg %p122
      $region38: #{decoder_block_forward.2} parent=35 // pred_check_branch
        %269 = sbr.rel (%p267) target = $region40
      $region39: #{decoder_block_forward.2} parent=35 // pred_region
        _
      $region40: #{decoder_block_forward.2} parent=35 // pred_fallthru
        _
    $region36: #{decoder_block_forward.2} parent=5 // pred_fallthru
      _
    %p270 = scmp.le.s32.totalorder 2, %s10
    // Predicated region
    $region41: #{decoder_block_forward.2} parent=5 // pred_check
      %p271 = pneg %p270
    $region42: #{decoder_block_forward.2} parent=5 // pred_check_branch
      %273 = sbr.rel (%p271) target = $region44
    $region43: #{decoder_block_forward.2} parent=5 // pred_region
      %s274 = ssub.s32 %s10, 2
      // Predicated region
      $region45: #{decoder_block_forward.2} parent=43 // pred_check
        %p275 = pneg %p128
      $region46: #{decoder_block_forward.2} parent=43 // pred_check_branch
        %277 = sbr.rel (%p275) target = $region48
      $region47: #{decoder_block_forward.2} parent=43 // pred_region
        %p278 = scmp.lt.s32.totalorder %s16, 1
        %s279 = scalar_select %p278, %s16, 1
        %s280 = smul.addr %s279, 2
        %s281 = smul.addr %s280, 4
        %s282 = scalar_lea.vmem %s4, %s281
      $region48: #{decoder_block_forward.2} parent=43 // pred_fallthru
        _
    $region44: #{decoder_block_forward.2} parent=5 // pred_fallthru
      _
  $region6: #{decoder_block_forward.2} parent=0 // loop_footer
    %s14 = sadd.s32 1, %s10
  $region7: #{decoder_block_forward.2} parent=0 // loop_footer_branch
    %9 = sbr.rel target = $region3
  $region8: #{decoder_block_forward.2} parent=0 // loop_exit
    _

// kernel: decoder_block_forward.3
$region0: #{decoder_block_forward.3}
  #allocation0 [shape = 'u32[]', space=smem, size = 0x4, offset = 0x4, fixed_abs, tag = 'smem constant byte address 0x4 - core index']
  #allocation1 [shape = 'u32[72,128]{1,0:T(1,128)}', space=vmem, size = 0x9000, scoped, tag = 'internal scratch']
  #allocation2 [shape = 'f32[8,512]{1,0:T(8,128)}', space=vmem, size = 0x4000, scoped, tag = 'scratch operand']
  #allocation3 [shape = 'f32[4,512]{1,0:T(4,128)}', space=vmem, size = 0x2000, scoped, tag = 'scratch operand']
  %s0 = inlined_call_operand.vmem [shape: f32[2,4,256], index: 0, kind: input, shape index: {}]
  %s1 = inlined_call_operand.vmem [shape: bf16[2,4,256], index: 1, kind: input, shape index: {}]
  %s2 = inlined_call_operand.vmem [shape: f32[4,1], index: 2, kind: input, shape index: {}]
  %s3 = inlined_call_operand.vmem [shape: f32[4,1], index: 3, kind: input, shape index: {}]
  %s4 = inlined_call_operand.vmem [shape: f32[4,1], index: 4, kind: input, shape index: {}, may-alias: {4,7,10}]
  %s5 = inlined_call_operand.vmem [shape: bf16[9,4,8], index: 5, kind: input, shape index: {}]
  %s6 = inlined_call_operand.vmem [shape: f32[4,1], index: 6, kind: input, shape index: {}]
  %s7 = inlined_call_operand.vmem [shape: f32[4,1], index: 7, kind: input, shape index: {}, may-alias: {4,7,10}]
  %s8 = inlined_call_operand.vmem [shape: bf16[9,4,4], index: 8, kind: input, shape index: {}]
  %s9 = inlined_call_operand.vmem [shape: f32[4,1], index: 9, kind: input, shape index: {}]
  %s10 = inlined_call_operand.vmem [shape: f32[4,1], index: 10, kind: input, shape index: {}, may-alias: {4,7,10}]
  %s11 = inlined_call_operand.vmem [shape: f32[2,256], index: 11, kind: input, shape index: {}]
  %s12 = inlined_call_operand.vmem [shape: f32[2,4,256], index: 12, kind: output, shape index: {}]
  %s13 = sld [smem:[#allocation0]]
  $region81: #{decoder_block_forward.3} parent=0
    _
  %s15 = ssub.s32 1, %s13
  %s16 = scalar_select 0, %s15, %s13
  loop: start=0, step=1, limit=4
  $region2: #{decoder_block_forward.3} parent=0 // loop_pre_header
    _
  $region3: #{decoder_block_forward.3} parent=0 // loop_header
    %s18 = sphi 0, %s22
    %p19 = scmp.ge.s32.totalorder %s18, 4
    %s28 = sphi 0, %s30
    %s31 = sphi 0, %s28
    %s32 = sphi 0, %s31
    %s48 = sphi 0, %s32
    %s54 = sphi 0, %s56
    %s57 = sphi 0, %s54
    %s58 = sphi 0, %s57
    %s74 = sphi 0, %s58
    %s78 = sphi 0, %s78
    %s80 = sphi 0, %s78
    %s81 = sphi 0, %s80
    %s95 = sphi 0, %s81
    %s99 = sphi 0, %s99
    %s101 = sphi 0, %s99
    %s102 = sphi 0, %s101
    %s116 = sphi 0, %s102
    %s120 = sphi 0, %s120
    %s122 = sphi 0, %s120
    %s123 = sphi 0, %s122
    %s137 = sphi 0, %s123
    %s141 = sphi 0, %s141
    %s143 = sphi 0, %s141
    %s144 = sphi 0, %s143
    %s158 = sphi 0, %s144
    %s162 = sphi 0, %s162
    %s164 = sphi 0, %s162
    %s165 = sphi 0, %s164
    %s179 = sphi 0, %s165
    %s183 = sphi 0, %s183
    %s185 = sphi 0, %s183
    %s186 = sphi 0, %s185
    %s200 = sphi 0, %s186
    %s204 = sphi 0, %s204
    %s206 = sphi 0, %s204
    %s207 = sphi 0, %s206
    %s221 = sphi 0, %s207
    %s225 = sphi 0, %s225
    %s227 = sphi 0, %s225
    %s228 = sphi 0, %s227
    %s242 = sphi 0, %s228
    %s246 = sphi 0, %s246
    %s248 = sphi 0, %s246
    %s249 = sphi 0, %s248
    %s263 = sphi 0, %s249
    %s267 = sphi 0, %s267
    %s269 = sphi 0, %s267
    %s270 = sphi 0, %s269
    %s284 = sphi 0, %s270
    %s290 = sphi 0, %s292
    %s293 = sphi 0, %s290
    %s294 = sphi 0, %s293
    %s310 = sphi 0, %s294
  $region4: #{decoder_block_forward.3} parent=0 // loop_header_branch
    %21 = sbr.rel (%p19) target = $region8
  $region5: #{decoder_block_forward.3} parent=0 // loop_body
    %s23 = ssub.s32 %s18, 1
    %s24 = ssub.s32 %s18, 2
    %s25 = sadd.s32 %s18, 1
    %s26 = ssub.s32 %s18, %s25
    %p27 = scmp.eq.s32.totalorder %s26, 0
    %s29 = sadd.s32 %s28, 1
    %s30 = scalar_select %p27, %s28, %s29
    %p33 = pneg %p27
    %p34 = scmp.eq.s32.totalorder %s18, 1
    %p35 = por %p33, %p34
    %p36 = scmp.ne.s32.totalorder %s28, %s31
    %p37 = scmp.eq.s32.totalorder %s18, 0
    %p38 = por %p36, %p37
    %p39 = scmp.ne.s32.totalorder %s28, %s31
    %p40 = scmp.eq.s32.totalorder %s23, 1
    %p41 = por %p39, %p40
    %p42 = scmp.ne.s32.totalorder %s31, %s32
    %p43 = scmp.eq.s32.totalorder %s23, 0
    %p44 = por %p42, %p43
    %p45 = scmp.ne.s32.totalorder %s31, %s32
    %p46 = scmp.eq.s32.totalorder %s24, 1
    %p47 = por %p45, %p46
    %p49 = scmp.ne.s32.totalorder %s32, %s48
    %p50 = scmp.eq.s32.totalorder %s24, 0
    %p51 = por %p49, %p50
    %s52 = ssub.s32 %s18, %s25
    %p53 = scmp.eq.s32.totalorder %s52, 0
    %s55 = sadd.s32 %s54, 1
    %s56 = scalar_select %p53, %s54, %s55
    %p59 = pneg %p53
    %p60 = scmp.eq.s32.totalorder %s18, 1
    %p61 = por %p59, %p60
    %p62 = scmp.ne.s32.totalorder %s54, %s57
    %p63 = scmp.eq.s32.totalorder %s18, 0
    %p64 = por %p62, %p63
    %p65 = scmp.ne.s32.totalorder %s54, %s57
    %p66 = scmp.eq.s32.totalorder %s23, 1
    %p67 = por %p65, %p66
    %p68 = scmp.ne.s32.totalorder %s57, %s58
    %p69 = scmp.eq.s32.totalorder %s23, 0
    %p70 = por %p68, %p69
    %p71 = scmp.ne.s32.totalorder %s57, %s58
    %p72 = scmp.eq.s32.totalorder %s24, 1
    %p73 = por %p71, %p72
    %p75 = scmp.ne.s32.totalorder %s58, %s74
    %p76 = scmp.eq.s32.totalorder %s24, 0
    %p77 = por %p75, %p76
    %s79 = sadd.s32 %s78, 1
    %p82 = scmp.eq.s32.totalorder %s18, 1
    %p83 = scmp.ne.s32.totalorder %s78, %s80
    %p84 = scmp.eq.s32.totalorder %s18, 0
    %p85 = por %p83, %p84
    %p86 = scmp.ne.s32.totalorder %s78, %s80
    %p87 = scmp.eq.s32.totalorder %s23, 1
    %p88 = por %p86, %p87
    %p89 = scmp.ne.s32.totalorder %s80, %s81
    %p90 = scmp.eq.s32.totalorder %s23, 0
    %p91 = por %p89, %p90
    %p92 = scmp.ne.s32.totalorder %s80, %s81
    %p93 = scmp.eq.s32.totalorder %s24, 1
    %p94 = por %p92, %p93
    %p96 = scmp.ne.s32.totalorder %s81, %s95
    %p97 = scmp.eq.s32.totalorder %s24, 0
    %p98 = por %p96, %p97
    %s100 = sadd.s32 %s99, 1
    %p103 = scmp.eq.s32.totalorder %s18, 1
    %p104 = scmp.ne.s32.totalorder %s99, %s101
    %p105 = scmp.eq.s32.totalorder %s18, 0
    %p106 = por %p104, %p105
    %p107 = scmp.ne.s32.totalorder %s99, %s101
    %p108 = scmp.eq.s32.totalorder %s23, 1
    %p109 = por %p107, %p108
    %p110 = scmp.ne.s32.totalorder %s101, %s102
    %p111 = scmp.eq.s32.totalorder %s23, 0
    %p112 = por %p110, %p111
    %p113 = scmp.ne.s32.totalorder %s101, %s102
    %p114 = scmp.eq.s32.totalorder %s24, 1
    %p115 = por %p113, %p114
    %p117 = scmp.ne.s32.totalorder %s102, %s116
    %p118 = scmp.eq.s32.totalorder %s24, 0
    %p119 = por %p117, %p118
    %s121 = sadd.s32 %s120, 1
    %p124 = scmp.eq.s32.totalorder %s18, 1
    %p125 = scmp.ne.s32.totalorder %s120, %s122
    %p126 = scmp.eq.s32.totalorder %s18, 0
    %p127 = por %p125, %p126
    %p128 = scmp.ne.s32.totalorder %s120, %s122
    %p129 = scmp.eq.s32.totalorder %s23, 1
    %p130 = por %p128, %p129
    %p131 = scmp.ne.s32.totalorder %s122, %s123
    %p132 = scmp.eq.s32.totalorder %s23, 0
    %p133 = por %p131, %p132
    %p134 = scmp.ne.s32.totalorder %s122, %s123
    %p135 = scmp.eq.s32.totalorder %s24, 1
    %p136 = por %p134, %p135
    %p138 = scmp.ne.s32.totalorder %s123, %s137
    %p139 = scmp.eq.s32.totalorder %s24, 0
    %p140 = por %p138, %p139
    %s142 = sadd.s32 %s141, 1
    %p145 = scmp.eq.s32.totalorder %s18, 1
    %p146 = scmp.ne.s32.totalorder %s141, %s143
    %p147 = scmp.eq.s32.totalorder %s18, 0
    %p148 = por %p146, %p147
    %p149 = scmp.ne.s32.totalorder %s141, %s143
    %p150 = scmp.eq.s32.totalorder %s23, 1
    %p151 = por %p149, %p150
    %p152 = scmp.ne.s32.totalorder %s143, %s144
    %p153 = scmp.eq.s32.totalorder %s23, 0
    %p154 = por %p152, %p153
    %p155 = scmp.ne.s32.totalorder %s143, %s144
    %p156 = scmp.eq.s32.totalorder %s24, 1
    %p157 = por %p155, %p156
    %p159 = scmp.ne.s32.totalorder %s144, %s158
    %p160 = scmp.eq.s32.totalorder %s24, 0
    %p161 = por %p159, %p160
    %s163 = sadd.s32 %s162, 1
    %p166 = scmp.eq.s32.totalorder %s18, 1
    %p167 = scmp.ne.s32.totalorder %s162, %s164
    %p168 = scmp.eq.s32.totalorder %s18, 0
    %p169 = por %p167, %p168
    %p170 = scmp.ne.s32.totalorder %s162, %s164
    %p171 = scmp.eq.s32.totalorder %s23, 1
    %p172 = por %p170, %p171
    %p173 = scmp.ne.s32.totalorder %s164, %s165
    %p174 = scmp.eq.s32.totalorder %s23, 0
    %p175 = por %p173, %p174
    %p176 = scmp.ne.s32.totalorder %s164, %s165
    %p177 = scmp.eq.s32.totalorder %s24, 1
    %p178 = por %p176, %p177
    %p180 = scmp.ne.s32.totalorder %s165, %s179
    %p181 = scmp.eq.s32.totalorder %s24, 0
    %p182 = por %p180, %p181
    %s184 = sadd.s32 %s183, 1
    %p187 = scmp.eq.s32.totalorder %s18, 1
    %p188 = scmp.ne.s32.totalorder %s183, %s185
    %p189 = scmp.eq.s32.totalorder %s18, 0
    %p190 = por %p188, %p189
    %p191 = scmp.ne.s32.totalorder %s183, %s185
    %p192 = scmp.eq.s32.totalorder %s23, 1
    %p193 = por %p191, %p192
    %p194 = scmp.ne.s32.totalorder %s185, %s186
    %p195 = scmp.eq.s32.totalorder %s23, 0
    %p196 = por %p194, %p195
    %p197 = scmp.ne.s32.totalorder %s185, %s186
    %p198 = scmp.eq.s32.totalorder %s24, 1
    %p199 = por %p197, %p198
    %p201 = scmp.ne.s32.totalorder %s186, %s200
    %p202 = scmp.eq.s32.totalorder %s24, 0
    %p203 = por %p201, %p202
    %s205 = sadd.s32 %s204, 1
    %p208 = scmp.eq.s32.totalorder %s18, 1
    %p209 = scmp.ne.s32.totalorder %s204, %s206
    %p210 = scmp.eq.s32.totalorder %s18, 0
    %p211 = por %p209, %p210
    %p212 = scmp.ne.s32.totalorder %s204, %s206
    %p213 = scmp.eq.s32.totalorder %s23, 1
    %p214 = por %p212, %p213
    %p215 = scmp.ne.s32.totalorder %s206, %s207
    %p216 = scmp.eq.s32.totalorder %s23, 0
    %p217 = por %p215, %p216
    %p218 = scmp.ne.s32.totalorder %s206, %s207
    %p219 = scmp.eq.s32.totalorder %s24, 1
    %p220 = por %p218, %p219
    %p222 = scmp.ne.s32.totalorder %s207, %s221
    %p223 = scmp.eq.s32.totalorder %s24, 0
    %p224 = por %p222, %p223
    %s226 = sadd.s32 %s225, 1
    %p229 = scmp.eq.s32.totalorder %s18, 1
    %p230 = scmp.ne.s32.totalorder %s225, %s227
    %p231 = scmp.eq.s32.totalorder %s18, 0
    %p232 = por %p230, %p231
    %p233 = scmp.ne.s32.totalorder %s225, %s227
    %p234 = scmp.eq.s32.totalorder %s23, 1
    %p235 = por %p233, %p234
    %p236 = scmp.ne.s32.totalorder %s227, %s228
    %p237 = scmp.eq.s32.totalorder %s23, 0
    %p238 = por %p236, %p237
    %p239 = scmp.ne.s32.totalorder %s227, %s228
    %p240 = scmp.eq.s32.totalorder %s24, 1
    %p241 = por %p239, %p240
    %p243 = scmp.ne.s32.totalorder %s228, %s242
    %p244 = scmp.eq.s32.totalorder %s24, 0
    %p245 = por %p243, %p244
    %s247 = sadd.s32 %s246, 1
    %p250 = scmp.eq.s32.totalorder %s18, 1
    %p251 = scmp.ne.s32.totalorder %s246, %s248
    %p252 = scmp.eq.s32.totalorder %s18, 0
    %p253 = por %p251, %p252
    %p254 = scmp.ne.s32.totalorder %s246, %s248
    %p255 = scmp.eq.s32.totalorder %s23, 1
    %p256 = por %p254, %p255
    %p257 = scmp.ne.s32.totalorder %s248, %s249
    %p258 = scmp.eq.s32.totalorder %s23, 0
    %p259 = por %p257, %p258
    %p260 = scmp.ne.s32.totalorder %s248, %s249
    %p261 = scmp.eq.s32.totalorder %s24, 1
    %p262 = por %p260, %p261
    %p264 = scmp.ne.s32.totalorder %s249, %s263
    %p265 = scmp.eq.s32.totalorder %s24, 0
    %p266 = por %p264, %p265
    %s268 = sadd.s32 %s267, 1
    %p271 = scmp.eq.s32.totalorder %s18, 1
    %p272 = scmp.ne.s32.totalorder %s267, %s269
    %p273 = scmp.eq.s32.totalorder %s18, 0
    %p274 = por %p272, %p273
    %p275 = scmp.ne.s32.totalorder %s267, %s269
    %p276 = scmp.eq.s32.totalorder %s23, 1
    %p277 = por %p275, %p276
    %p278 = scmp.ne.s32.totalorder %s269, %s270
    %p279 = scmp.eq.s32.totalorder %s23, 0
    %p280 = por %p278, %p279
    %p281 = scmp.ne.s32.totalorder %s269, %s270
    %p282 = scmp.eq.s32.totalorder %s24, 1
    %p283 = por %p281, %p282
    %p285 = scmp.ne.s32.totalorder %s270, %s284
    %p286 = scmp.eq.s32.totalorder %s24, 0
    %p287 = por %p285, %p286
    %s288 = ssub.s32 %s18, %s25
    %p289 = scmp.eq.s32.totalorder %s288, 0
    %s291 = sadd.s32 %s290, 1
    %s292 = scalar_select %p289, %s290, %s291
    %p295 = pneg %p289
    %p296 = scmp.eq.s32.totalorder %s18, 1
    %p297 = por %p295, %p296
    %p298 = scmp.ne.s32.totalorder %s290, %s293
    %p299 = scmp.eq.s32.totalorder %s18, 0
    %p300 = por %p298, %p299
    %p301 = scmp.ne.s32.totalorder %s290, %s293
    %p302 = scmp.eq.s32.totalorder %s23, 1
    %p303 = por %p301, %p302
    %p304 = scmp.ne.s32.totalorder %s293, %s294
    %p305 = scmp.eq.s32.totalorder %s23, 0
    %p306 = por %p304, %p305
    %p307 = scmp.ne.s32.totalorder %s293, %s294
    %p308 = scmp.eq.s32.totalorder %s24, 1
    %p309 = por %p307, %p308
    %p311 = scmp.ne.s32.totalorder %s294, %s310
    %p312 = scmp.eq.s32.totalorder %s24, 0
    %p313 = por %p311, %p312
    %p314 = scmp.le.s32.totalorder 1, %s18
    %p315 = scmp.lt.s32.totalorder %s18, 3
    %p316 = pnand %p314, %p315
    %p317 = pneg %p316
    // Predicated region
    $region9: #{decoder_block_forward.3} parent=5 // pred_check
      _
    $region10: #{decoder_block_forward.3} parent=5 // pred_check_branch
      %319 = sbr.rel (%p316) target = $region12
    $region11: #{decoder_block_forward.3} parent=5 // pred_region
      %s320 = ssub.s32 %s18, 1
      // Predicated region
      $region13: #{decoder_block_forward.3} parent=11 // pred_check
        %p321 = pneg %p91
      $region14: #{decoder_block_forward.3} parent=11 // pred_check_branch
        %323 = sbr.rel (%p321) target = $region16
      $region15: #{decoder_block_forward.3} parent=11 // pred_region
        _
      $region16: #{decoder_block_forward.3} parent=11 // pred_fallthru
        _
      // Predicated region
      $region17: #{decoder_block_forward.3} parent=11 // pred_check
        %p324 = pneg %p112
      $region18: #{decoder_block_forward.3} parent=11 // pred_check_branch
        %326 = sbr.rel (%p324) target = $region20
      $region19: #{decoder_block_forward.3} parent=11 // pred_region
        _
      $region20: #{decoder_block_forward.3} parent=11 // pred_fallthru
        _
      // Predicated region
      $region21: #{decoder_block_forward.3} parent=11 // pred_check
        %p327 = pneg %p133
      $region22: #{decoder_block_forward.3} parent=11 // pred_check_branch
        %329 = sbr.rel (%p327) target = $region24
      $region23: #{decoder_block_forward.3} parent=11 // pred_region
        _
      $region24: #{decoder_block_forward.3} parent=11 // pred_fallthru
        _
      // Predicated region
      $region25: #{decoder_block_forward.3} parent=11 // pred_check
        %p330 = pneg %p154
      $region26: #{decoder_block_forward.3} parent=11 // pred_check_branch
        %332 = sbr.rel (%p330) target = $region28
      $region27: #{decoder_block_forward.3} parent=11 // pred_region
        _
      $region28: #{decoder_block_forward.3} parent=11 // pred_fallthru
        _
      // Predicated region
      $region29: #{decoder_block_forward.3} parent=11 // pred_check
        %p333 = pneg %p175
      $region30: #{decoder_block_forward.3} parent=11 // pred_check_branch
        %335 = sbr.rel (%p333) target = $region32
      $region31: #{decoder_block_forward.3} parent=11 // pred_region
        _
      $region32: #{decoder_block_forward.3} parent=11 // pred_fallthru
        _
      // Predicated region
      $region33: #{decoder_block_forward.3} parent=11 // pred_check
        %p336 = pneg %p196
      $region34: #{decoder_block_forward.3} parent=11 // pred_check_branch
        %338 = sbr.rel (%p336) target = $region36
      $region35: #{decoder_block_forward.3} parent=11 // pred_region
        _
      $region36: #{decoder_block_forward.3} parent=11 // pred_fallthru
        _
      // Predicated region
      $region37: #{decoder_block_forward.3} parent=11 // pred_check
        %p339 = pneg %p217
      $region38: #{decoder_block_forward.3} parent=11 // pred_check_branch
        %341 = sbr.rel (%p339) target = $region40
      $region39: #{decoder_block_forward.3} parent=11 // pred_region
        _
      $region40: #{decoder_block_forward.3} parent=11 // pred_fallthru
        _
      // Predicated region
      $region41: #{decoder_block_forward.3} parent=11 // pred_check
        %p342 = pneg %p238
      $region42: #{decoder_block_forward.3} parent=11 // pred_check_branch
        %344 = sbr.rel (%p342) target = $region44
      $region43: #{decoder_block_forward.3} parent=11 // pred_region
        _
      $region44: #{decoder_block_forward.3} parent=11 // pred_fallthru
        _
      // Predicated region
      $region45: #{decoder_block_forward.3} parent=11 // pred_check
        %p345 = pneg %p259
      $region46: #{decoder_block_forward.3} parent=11 // pred_check_branch
        %347 = sbr.rel (%p345) target = $region48
      $region47: #{decoder_block_forward.3} parent=11 // pred_region
        _
      $region48: #{decoder_block_forward.3} parent=11 // pred_fallthru
        _
      // Predicated region
      $region49: #{decoder_block_forward.3} parent=11 // pred_check
        %p348 = pneg %p280
      $region50: #{decoder_block_forward.3} parent=11 // pred_check_branch
        %350 = sbr.rel (%p348) target = $region52
      $region51: #{decoder_block_forward.3} parent=11 // pred_region
        _
      $region52: #{decoder_block_forward.3} parent=11 // pred_fallthru
        _
    $region12: #{decoder_block_forward.3} parent=5 // pred_fallthru
      _
    %p351 = scmp.lt.s32.totalorder %s18, 2
    // Predicated region
    $region53: #{decoder_block_forward.3} parent=5 // pred_check
      %p352 = pneg %p351
    $region54: #{decoder_block_forward.3} parent=5 // pred_check_branch
      %354 = sbr.rel (%p352) target = $region56
    $region55: #{decoder_block_forward.3} parent=5 // pred_region
      // Predicated region
      $region57: #{decoder_block_forward.3} parent=55 // pred_check
        %p355 = pneg %p38
      $region58: #{decoder_block_forward.3} parent=55 // pred_check_branch
        %357 = sbr.rel (%p355) target = $region60
      $region59: #{decoder_block_forward.3} parent=55 // pred_region
        %p358 = scmp.lt.s32.totalorder %s18, 1
        %s359 = scalar_select %p358, %s18, 1
        %s360 = smul.addr %s359, 2
        %s361 = smul.addr %s360, 4
        %s362 = scalar_lea.vmem %s0, %s361
      $region60: #{decoder_block_forward.3} parent=55 // pred_fallthru
        _
      // Predicated region
      $region61: #{decoder_block_forward.3} parent=55 // pred_check
        %p363 = pneg %p64
      $region62: #{decoder_block_forward.3} parent=55 // pred_check_branch
        %365 = sbr.rel (%p363) target = $region64
      $region63: #{decoder_block_forward.3} parent=55 // pred_region
        %p366 = scmp.lt.s32.totalorder %s18, 1
        %s367 = scalar_select %p366, %s18, 1
        %s368 = smul.addr %s367, 2
        %s369 = smul.addr %s368, 2
        %s370 = scalar_lea.vmem %s1, %s369
      $region64: #{decoder_block_forward.3} parent=55 // pred_fallthru
        _
    $region56: #{decoder_block_forward.3} parent=5 // pred_fallthru
      _
    %p371 = scmp.le.s32.totalorder 1, %s18
    %p372 = scmp.lt.s32.totalorder %s18, 3
    %p373 = pnand %p371, %p372
    %p374 = pneg %p373
    // Predicated region
    $region65: #{decoder_block_forward.3} parent=5 // pred_check
      _
    $region66: #{decoder_block_forward.3} parent=5 // pred_check_branch
      %376 = sbr.rel (%p373) target = $region68
    $region67: #{decoder_block_forward.3} parent=5 // pred_region
      %s377 = ssub.s32 %s18, 1
      %p378 = scmp.lt.s32.totalorder %s23, 1
      %s379 = scalar_select %p378, %s23, 1
      %s380 = smul.addr %s379, 2
      %s381 = smul.addr %s380, 4
      %s382 = scalar_lea.vmem %s0, %s381
      %p383 = pneg %p44
      %p384 = pneg %p41
      %p385 = scmp.lt.s32.totalorder %s23, 1
      %s386 = scalar_select %p385, %s23, 1
      %s387 = smul.addr %s386, 2
      %s388 = smul.addr %s387, 2
      %s389 = scalar_lea.vmem %s1, %s388
      %p390 = pneg %p70
      %p391 = pneg %p67
      %p392 = pneg %p91
      %p393 = pneg %p88
      %p394 = pneg %p112
      %p395 = pneg %p109
      %p396 = pneg %p133
      %p397 = pneg %p130
      %p398 = pneg %p154
      %p399 = pneg %p151
      %p400 = pneg %p175
      %p401 = pneg %p172
      %p402 = pneg %p196
      %p403 = pneg %p193
      %p404 = pneg %p217
      %p405 = pneg %p214
      %p406 = pneg %p238
      %p407 = pneg %p235
      %p408 = pneg %p259
      %p409 = pneg %p256
      %p410 = pneg %p280
      %p411 = pneg %p277
      %p412 = pneg %p306
      %p413 = pneg %p303
      %p414 = scmp.lt.s32.totalorder %s23, 1
      %s415 = scalar_select %p414, %s23, 1
      %s416 = smul.addr %s415, 2
      %s417 = smul.addr %s416, 4
      %s418 = scalar_lea.vmem %s12, %s417
      %p419 = scmp.lt.s32.totalorder %s23, 1
      %s420 = scalar_select %p419, %s23, 1
      %s421 = smul.addr %s420, 2
      %s422 = smul.addr %s421, 4
      %s423 = scalar_lea.vmem %s0, %s422
      %p424 = scmp.lt.s32.totalorder %s23, 1
      %s425 = scalar_select %p424, %s23, 1
      %s426 = smul.addr %s425, 2
      %s427 = smul.addr %s426, 2
      %s428 = scalar_lea.vmem %s1, %s427
      %p429 = scmp.lt.s32.totalorder %s23, 1
      %s430 = scalar_select %p429, %s23, 1
      %s431 = smul.addr %s430, 2
      %s432 = smul.addr %s431, 4
      %s433 = scalar_lea.vmem %s12, %s432
      %v435 = vld [vmem:[%s11] ss:$2 sm:$0x3]
      %s436 = scalar_lea.vmem %s11, 1
      %v437 = vld [vmem:[%s436] ss:$2 sm:$0x3]
      %438 = vst [vmem:[#allocation2] sm:$0xff] 0.0
      %439 = vst [vmem:[#allocation2 + $0x18] sm:$0xff] 0.0
      %440 = vst [vmem:[#allocation3] sm:$0xf] 0.0
      %441 = vst [vmem:[#allocation3 + $0xc] sm:$0xf] 0.0
      %v442 = vld [vmem:[%s423] sm:$0xff]
      %v443 = vld [vmem:[%s2] sm:$0xf]
      %445 = vset.pattern.permute.xlu0 0
      %446 = vperm.xlu0 %445, %v443
      %v447 = vpop.permute.xlu0 %446
      %v449 = vunpack.c.l.s4 839922192
      %v450 = vunpack.c.0.s8 %v449
      %v451 = vperm.slane %v447, %v450
      %v453 = vmul.f32 %v442, %v451
      %v454 = vld [vmem:[%s3] sm:$0xf]
      %456 = vset.pattern.permute.xlu0 0
      %457 = vperm.xlu0 %456, %v454
      %v458 = vpop.permute.xlu0 %457
      %v460 = vunpack.c.l.s4 839922192
      %v461 = vunpack.c.0.s8 %v460
      %v462 = vperm.slane %v458, %v461
      %v464 = vadd.f32 %v453, %v462
      %vm465 = vcmp.ge.f32.partialorder %v464, 0.0
      %v466 = vld [vmem:[%s4] sm:$0xf]
      %468 = vset.pattern.permute.xlu0 0
      %469 = vperm.xlu0 %468, %v466
      %v470 = vpop.permute.xlu0 %469
      %v472 = vunpack.c.l.s4 839922192
      %v473 = vunpack.c.0.s8 %v472
      %v474 = vperm.slane %v470, %v473
      %v476 = vmul.f32 %v464, %v474
      %v477 = vsel %vm465, %v464, %v476
      %479 = vst [vmem:[#allocation1] ss:$2 sm:$0xff] %v477
      %v480 = vld.sshfl [vmem:[#allocation1] sm:$0xff pattern:$0x75316420]
      %v481 = vld.sshfl [vmem:[#allocation1 + $0x8] sm:$0xff pattern:$0x75316420]
      %484 = vst [vmem:[#allocation2 + $0x8] sm:$0xf] %v480
      %485 = vst [vmem:[#allocation2 + $0x10] sm:$0xf] %v481
      %v486 = vld [vmem:[%s428] sm:$0xf]
      %v487 = vunpack.c.l.bf16 %v486
      %s489 = scalar_lea.vmem [#allocation1], 1
      %490 = vst [vmem:[%s489] ss:$2 sm:$0xff] %v487
      %v491 = vld.sshfl [vmem:[#allocation1] sm:$0xff pattern:$0x75316420]
      %v492 = vld.sshfl [vmem:[#allocation1 + $0x8] sm:$0xff pattern:$0x75316420]
      %495 = vst [vmem:[#allocation2 + $0x8] sm:$0xf0] %v491
      %496 = vst [vmem:[#allocation2 + $0x10] sm:$0xf0] %v492
      %v497 = vld [vmem:[#allocation2] sm:$0xff]
      %v498 = vld [vmem:[#allocation2 + $0x8] sm:$0xff]
      %v499 = vld [vmem:[#allocation2 + $0x10] sm:$0xff]
      %v501 = vperm.slane %v435, 0
      %v502 = vperm.slane %v435, 1
      %503 = vrot.lane.b32.xlu0 %v501, 111
      %v504 = vpop.permute.xlu0 %503
      %505 = vrot.lane.b32.xlu0 %v502, 111
      %v506 = vpop.permute.xlu0 %505
      %vm507 = vcmask 908288
      %v508 = vsel %vm507, %v504, %v506
      %v512 = vmul.f32 %v497, %v504
      %v513 = vmul.f32 %v498, %v508
      %v514 = vmul.f32 %v499, %v506
      %v515 = vld [vmem:[%s5] sm:$0x3]
      %v516 = vpack.c.bf16 %v512, %v512
      %v517 = vpack.c.bf16 %v513, %v513
      %v518 = vpack.c.bf16 %v514, %v514
      %s519 = scalar_lea.vmem %s5, 2
      %v520 = vld [vmem:[%s519] sm:$0x3]
      %v521 = vpack.c.bf16 %v497, %v497
      %v522 = vpack.c.bf16 %v498, %v498
      %v523 = vpack.c.bf16 %v499, %v499
      %527 = vrot.lane.b32.xlu0 %v521, 16
      %v528 = vpop.permute.xlu0 %527
      %529 = vrot.lane.b32.xlu0 %v522, 16
      %v530 = vpop.permute.xlu0 %529
      %531 = vrot.lane.b32.xlu0 %v523, 16
      %v532 = vpop.permute.xlu0 %531
      %vm533 = vcmask 130048
      %v534 = vsel %vm533, %v528, %v530
      %v535 = vsel %vm533, %v530, %v532
      %vm536 = vcmask 64512
      %v538 = vsel %vm536, %v520, 0
      %vm540 = vcmask 1043456
      %v542 = vsel %vm540, %v534, 0
      %v545 = vsel %vm540, %v535, 0
      %547 = vmatpush.bf16.msra.mxu0 0
      %548 = vmatpush.bf16.msra.mxu0 0
      %549 = vmatpush.bf16.msra.mxu0 0
      %550 = vmatpush.bf16.msra.mxu0 0
      %551 = vmatpush.bf16.msra.mxu0 0
      %552 = vmatpush.bf16.msra.mxu0 0
      %553 = vmatpush.bf16.msra.mxu0 0
      %554 = vmatpush.bf16.msra.mxu0 %v542
      %555 = vmatmul.bf16.gmra.mxu0 %v538
      %v556 = vpop.f32.mrf.mxu0
      %v557 = vadd.f32 0.0, %v556
      %v558 = vpop.f32.mrf.mxu0
      %559 = vdwg.mxu0
      %560 = vmatpush.bf16.msra.mxu0 0
      %561 = vmatpush.bf16.msra.mxu0 0
      %562 = vmatpush.bf16.msra.mxu0 0
      %563 = vmatpush.bf16.msra.mxu0 0
      %564 = vmatpush.bf16.msra.mxu0 0
      %565 = vmatpush.bf16.msra.mxu0 0
      %566 = vmatpush.bf16.msra.mxu0 0
      %567 = vmatpush.bf16.msra.mxu0 %v545
      %568 = vmatmul.bf16.gmra.mxu0 %v538
      %v569 = vpop.f32.mrf.mxu0
      %v570 = vadd.f32 0.0, %v569
      %v571 = vpop.f32.mrf.mxu0
      %572 = vdwg.mxu0
      %576 = vrot.lane.b32.xlu0 %v516, 17
      %v577 = vpop.permute.xlu0 %576
      %578 = vrot.lane.b32.xlu0 %v517, 17
      %v579 = vpop.permute.xlu0 %578
      %580 = vrot.lane.b32.xlu0 %v518, 17
      %v581 = vpop.permute.xlu0 %580
      %vm582 = vcmask 138240
      %v583 = vsel %vm582, %v577, %v579
      %v584 = vsel %vm582, %v579, %v581
      %v586 = vsel %vm536, %v515, 0
      %v589 = vsel %vm540, %v583, 0
      %v592 = vsel %vm540, %v584, 0
      %594 = vmatpush.bf16.msra.mxu0 0
      %595 = vmatpush.bf16.msra.mxu0 0
      %596 = vmatpush.bf16.msra.mxu0 0
      %597 = vmatpush.bf16.msra.mxu0 0
      %598 = vmatpush.bf16.msra.mxu0 0
      %599 = vmatpush.bf16.msra.mxu0 0
      %600 = vmatpush.bf16.msra.mxu0 0
      %601 = vmatpush.bf16.msra.mxu0 %v589
      %602 = vmatmul.bf16.gmra.mxu0 %v586
      %v603 = vpop.f32.mrf.mxu0
      %v604 = vadd.f32 %v557, %v603
      %v605 = vpop.f32.mrf.mxu0
      %606 = vdwg.mxu0
      %607 = vmatpush.bf16.msra.mxu0 0
      %608 = vmatpush.bf16.msra.mxu0 0
      %609 = vmatpush.bf16.msra.mxu0 0
      %610 = vmatpush.bf16.msra.mxu0 0
      %611 = vmatpush.bf16.msra.mxu0 0
      %612 = vmatpush.bf16.msra.mxu0 0
      %613 = vmatpush.bf16.msra.mxu0 0
      %614 = vmatpush.bf16.msra.mxu0 %v592
      %615 = vmatmul.bf16.gmra.mxu0 %v586
      %v616 = vpop.f32.mrf.mxu0
      %v617 = vadd.f32 %v570, %v616
      %v618 = vpop.f32.mrf.mxu0
      %619 = vdwg.mxu0
      %v621 = vperm.slane %v437, 0
      %v622 = vperm.slane %v437, 1
      %623 = vrot.lane.b32.xlu0 %v621, 113
      %v624 = vpop.permute.xlu0 %623
      %625 = vrot.lane.b32.xlu0 %v622, 113
      %v626 = vpop.permute.xlu0 %625
      %vm627 = vcmask 924672
      %v628 = vsel %vm627, %v624, %v626
      %v632 = vmul.f32 %v497, %v624
      %v633 = vmul.f32 %v498, %v628
      %v634 = vmul.f32 %v499, %v626
      %s635 = scalar_lea.vmem %s5, 4
      %v636 = vld [vmem:[%s635] sm:$0x3]
      %v637 = vpack.c.bf16 %v632, %v632
      %v638 = vpack.c.bf16 %v633, %v633
      %v639 = vpack.c.bf16 %v634, %v634
      %643 = vrot.lane.b32.xlu0 %v637, 15
      %v644 = vpop.permute.xlu0 %643
      %645 = vrot.lane.b32.xlu0 %v638, 15
      %v646 = vpop.permute.xlu0 %645
      %647 = vrot.lane.b32.xlu0 %v639, 15
      %v648 = vpop.permute.xlu0 %647
      %vm649 = vcmask 121856
      %v650 = vsel %vm649, %v644, %v646
      %v651 = vsel %vm649, %v646, %v648
      %v653 = vsel %vm536, %v636, 0
      %v656 = vsel %vm540, %v650, 0
      %v659 = vsel %vm540, %v651, 0
      %661 = vmatpush.bf16.msra.mxu0 0
      %662 = vmatpush.bf16.msra.mxu0 0
      %663 = vmatpush.bf16.msra.mxu0 0
      %664 = vmatpush.bf16.msra.mxu0 0
      %665 = vmatpush.bf16.msra.mxu0 0
      %666 = vmatpush.bf16.msra.mxu0 0
      %667 = vmatpush.bf16.msra.mxu0 0
      %668 = vmatpush.bf16.msra.mxu0 %v656
      %669 = vmatmul.bf16.gmra.mxu0 %v653
      %v670 = vpop.f32.mrf.mxu0
      %v671 = vadd.f32 0.0, %v670
      %v672 = vpop.f32.mrf.mxu0
      %673 = vdwg.mxu0
      %674 = vmatpush.bf16.msra.mxu0 0
      %675 = vmatpush.bf16.msra.mxu0 0
      %676 = vmatpush.bf16.msra.mxu0 0
      %677 = vmatpush.bf16.msra.mxu0 0
      %678 = vmatpush.bf16.msra.mxu0 0
      %679 = vmatpush.bf16.msra.mxu0 0
      %680 = vmatpush.bf16.msra.mxu0 0
      %681 = vmatpush.bf16.msra.mxu0 %v659
      %682 = vmatmul.bf16.gmra.mxu0 %v653
      %v683 = vpop.f32.mrf.mxu0
      %v684 = vadd.f32 0.0, %v683
      %v685 = vpop.f32.mrf.mxu0
      %686 = vdwg.mxu0
      %v687 = vadd.f32 %v604, %v671
      %v688 = vadd.f32 %v617, %v684
      %689 = vrot.lane.b32.xlu0 %v501, 127
      %v690 = vpop.permute.xlu0 %689
      %691 = vrot.lane.b32.xlu0 %v502, 127
      %v692 = vpop.permute.xlu0 %691
      %vm693 = vcmask 1039360
      %v694 = vsel %vm693, %v690, %v692
      %v698 = vmul.f32 %v497, %v690
      %v699 = vmul.f32 %v498, %v694
      %v700 = vmul.f32 %v499, %v692
      %s701 = scalar_lea.vmem %s5, 6
      %v702 = vld [vmem:[%s701] sm:$0x3]
      %v703 = vpack.c.bf16 %v698, %v698
      %v704 = vpack.c.bf16 %v699, %v699
      %v705 = vpack.c.bf16 %v700, %v700
      %709 = vrot.lane.b32.xlu0 %v703, 1
      %v710 = vpop.permute.xlu0 %709
      %711 = vrot.lane.b32.xlu0 %v704, 1
      %v712 = vpop.permute.xlu0 %711
      %713 = vrot.lane.b32.xlu0 %v705, 1
      %v714 = vpop.permute.xlu0 %713
      %vm715 = vcmask 7168
      %v716 = vsel %vm715, %v710, %v712
      %v717 = vsel %vm715, %v712, %v714
      %v719 = vsel %vm536, %v702, 0
      %v722 = vsel %vm540, %v716, 0
      %v725 = vsel %vm540, %v717, 0
      %727 = vmatpush.bf16.msra.mxu0 0
      %728 = vmatpush.bf16.msra.mxu0 0
      %729 = vmatpush.bf16.msra.mxu0 0
      %730 = vmatpush.bf16.msra.mxu0 0
      %731 = vmatpush.bf16.msra.mxu0 0
      %732 = vmatpush.bf16.msra.mxu0 0
      %733 = vmatpush.bf16.msra.mxu0 0
      %734 = vmatpush.bf16.msra.mxu0 %v722
      %735 = vmatmul.bf16.gmra.mxu0 %v719
      %v736 = vpop.f32.mrf.mxu0
      %v737 = vadd.f32 0.0, %v736
      %v738 = vpop.f32.mrf.mxu0
      %739 = vdwg.mxu0
      %740 = vmatpush.bf16.msra.mxu0 0
      %741 = vmatpush.bf16.msra.mxu0 0
      %742 = vmatpush.bf16.msra.mxu0 0
      %743 = vmatpush.bf16.msra.mxu0 0
      %744 = vmatpush.bf16.msra.mxu0 0
      %745 = vmatpush.bf16.msra.mxu0 0
      %746 = vmatpush.bf16.msra.mxu0 0
      %747 = vmatpush.bf16.msra.mxu0 %v725
      %748 = vmatmul.bf16.gmra.mxu0 %v719
      %v749 = vpop.f32.mrf.mxu0
      %v750 = vadd.f32 0.0, %v749
      %v751 = vpop.f32.mrf.mxu0
      %752 = vdwg.mxu0
      %v753 = vadd.f32 %v687, %v737
      %v754 = vadd.f32 %v688, %v750
      %s755 = scalar_lea.vmem %s5, 8
      %v756 = vld [vmem:[%s755] sm:$0x3]
      %v758 = vsel %vm536, %v756, 0
      %v761 = vsel %vm540, %v522, 0
      %v764 = vsel %vm540, %v523, 0
      %766 = vmatpush.bf16.msra.mxu0 0
      %767 = vmatpush.bf16.msra.mxu0 0
      %768 = vmatpush.bf16.msra.mxu0 0
      %769 = vmatpush.bf16.msra.mxu0 0
      %770 = vmatpush.bf16.msra.mxu0 0
      %771 = vmatpush.bf16.msra.mxu0 0
      %772 = vmatpush.bf16.msra.mxu0 0
      %773 = vmatpush.bf16.msra.mxu0 %v761
      %774 = vmatmul.bf16.gmra.mxu0 %v758
      %v775 = vpop.f32.mrf.mxu0
      %v776 = vadd.f32 0.0, %v775
      %v777 = vpop.f32.mrf.mxu0
      %778 = vdwg.mxu0
      %779 = vmatpush.bf16.msra.mxu0 0
      %780 = vmatpush.bf16.msra.mxu0 0
      %781 = vmatpush.bf16.msra.mxu0 0
      %782 = vmatpush.bf16.msra.mxu0 0
      %783 = vmatpush.bf16.msra.mxu0 0
      %784 = vmatpush.bf16.msra.mxu0 0
      %785 = vmatpush.bf16.msra.mxu0 0
      %786 = vmatpush.bf16.msra.mxu0 %v764
      %787 = vmatmul.bf16.gmra.mxu0 %v758
      %v788 = vpop.f32.mrf.mxu0
      %v789 = vadd.f32 0.0, %v788
      %v790 = vpop.f32.mrf.mxu0
      %791 = vdwg.mxu0
      %v792 = vadd.f32 %v753, %v776
      %v793 = vadd.f32 %v754, %v789
      %v794 = vld [vmem:[#allocation2 + $0x8] sm:$0xff]
      %v795 = vld [vmem:[#allocation2 + $0x10] sm:$0xff]
      %v796 = vld [vmem:[#allocation2 + $0x18] sm:$0xff]
      %797 = vrot.lane.b32.xlu0 %v621, 1
      %v798 = vpop.permute.xlu0 %797
      %799 = vrot.lane.b32.xlu0 %v622, 1
      %v800 = vpop.permute.xlu0 %799
      %vm801 = vcmask 7168
      %v802 = vsel %vm801, %v798, %v800
      %v806 = vmul.f32 %v794, %v798
      %v807 = vmul.f32 %v795, %v802
      %v808 = vmul.f32 %v796, %v800
      %s809 = scalar_lea.vmem %s5, 10
      %v810 = vld [vmem:[%s809] sm:$0x3]
      %v811 = vpack.c.bf16 %v806, %v806
      %v812 = vpack.c.bf16 %v807, %v807
      %v813 = vpack.c.bf16 %v808, %v808
      %817 = vrot.lane.b32.xlu0 %v811, 127
      %v818 = vpop.permute.xlu0 %817
      %819 = vrot.lane.b32.xlu0 %v812, 127
      %v820 = vpop.permute.xlu0 %819
      %821 = vrot.lane.b32.xlu0 %v813, 127
      %v822 = vpop.permute.xlu0 %821
      %vm823 = vcmask 1039360
      %v824 = vsel %vm823, %v818, %v820
      %v825 = vsel %vm823, %v820, %v822
      %v827 = vsel %vm536, %v810, 0
      %v830 = vsel %vm540, %v824, 0
      %v833 = vsel %vm540, %v825, 0
      %835 = vmatpush.bf16.msra.mxu0 0
      %836 = vmatpush.bf16.msra.mxu0 0
      %837 = vmatpush.bf16.msra.mxu0 0
      %838 = vmatpush.bf16.msra.mxu0 0
      %839 = vmatpush.bf16.msra.mxu0 0
      %840 = vmatpush.bf16.msra.mxu0 0
      %841 = vmatpush.bf16.msra.mxu0 0
      %842 = vmatpush.bf16.msra.mxu0 %v830
      %843 = vmatmul.bf16.gmra.mxu0 %v827
      %v844 = vpop.f32.mrf.mxu0
      %v845 = vadd.f32 0.0, %v844
      %v846 = vpop.f32.mrf.mxu0
      %847 = vdwg.mxu0
      %848 = vmatpush.bf16.msra.mxu0 0
      %849 = vmatpush.bf16.msra.mxu0 0
      %850 = vmatpush.bf16.msra.mxu0 0
      %851 = vmatpush.bf16.msra.mxu0 0
      %852 = vmatpush.bf16.msra.mxu0 0
      %853 = vmatpush.bf16.msra.mxu0 0
      %854 = vmatpush.bf16.msra.mxu0 0
      %855 = vmatpush.bf16.msra.mxu0 %v833
      %856 = vmatmul.bf16.gmra.mxu0 %v827
      %v857 = vpop.f32.mrf.mxu0
      %v858 = vadd.f32 0.0, %v857
      %v859 = vpop.f32.mrf.mxu0
      %860 = vdwg.mxu0
      %v861 = vadd.f32 %v792, %v845
      %v862 = vadd.f32 %v793, %v858
      %863 = vrot.lane.b32.xlu0 %v501, 15
      %v864 = vpop.permute.xlu0 %863
      %865 = vrot.lane.b32.xlu0 %v502, 15
      %v866 = vpop.permute.xlu0 %865
      %vm867 = vcmask 121856
      %v868 = vsel %vm867, %v864, %v866
      %v872 = vmul.f32 %v794, %v864
      %v873 = vmul.f32 %v795, %v868
      %v874 = vmul.f32 %v796, %v866
      %s875 = scalar_lea.vmem %s5, 12
      %v876 = vld [vmem:[%s875] sm:$0x3]
      %v877 = vpack.c.bf16 %v872, %v872
      %v878 = vpack.c.bf16 %v873, %v873
      %v879 = vpack.c.bf16 %v874, %v874
      %883 = vrot.lane.b32.xlu0 %v877, 113
      %v884 = vpop.permute.xlu0 %883
      %885 = vrot.lane.b32.xlu0 %v878, 113
      %v886 = vpop.permute.xlu0 %885
      %887 = vrot.lane.b32.xlu0 %v879, 113
      %v888 = vpop.permute.xlu0 %887
      %vm889 = vcmask 924672
      %v890 = vsel %vm889, %v884, %v886
      %v891 = vsel %vm889, %v886, %v888
      %v893 = vsel %vm536, %v876, 0
      %v896 = vsel %vm540, %v890, 0
      %v899 = vsel %vm540, %v891, 0
      %901 = vmatpush.bf16.msra.mxu0 0
      %902 = vmatpush.bf16.msra.mxu0 0
      %903 = vmatpush.bf16.msra.mxu0 0
      %904 = vmatpush.bf16.msra.mxu0 0
      %905 = vmatpush.bf16.msra.mxu0 0
      %906 = vmatpush.bf16.msra.mxu0 0
      %907 = vmatpush.bf16.msra.mxu0 0
      %908 = vmatpush.bf16.msra.mxu0 %v896
      %909 = vmatmul.bf16.gmra.mxu0 %v893
      %v910 = vpop.f32.mrf.mxu0
      %v911 = vadd.f32 0.0, %v910
      %v912 = vpop.f32.mrf.mxu0
      %913 = vdwg.mxu0
      %914 = vmatpush.bf16.msra.mxu0 0
      %915 = vmatpush.bf16.msra.mxu0 0
      %916 = vmatpush.bf16.msra.mxu0 0
      %917 = vmatpush.bf16.msra.mxu0 0
      %918 = vmatpush.bf16.msra.mxu0 0
      %919 = vmatpush.bf16.msra.mxu0 0
      %920 = vmatpush.bf16.msra.mxu0 0
      %921 = vmatpush.bf16.msra.mxu0 %v899
      %922 = vmatmul.bf16.gmra.mxu0 %v893
      %v923 = vpop.f32.mrf.mxu0
      %v924 = vadd.f32 0.0, %v923
      %v925 = vpop.f32.mrf.mxu0
      %926 = vdwg.mxu0
      %v927 = vadd.f32 %v861, %v911
      %v928 = vadd.f32 %v862, %v924
      %s929 = scalar_lea.vmem %s5, 14
      %v930 = vld [vmem:[%s929] sm:$0x3]
      %v931 = vpack.c.bf16 %v794, %v794
      %v932 = vpack.c.bf16 %v795, %v795
      %v933 = vpack.c.bf16 %v796, %v796
      %937 = vrot.lane.b32.xlu0 %v931, 112
      %v938 = vpop.permute.xlu0 %937
      %939 = vrot.lane.b32.xlu0 %v932, 112
      %v940 = vpop.permute.xlu0 %939
      %941 = vrot.lane.b32.xlu0 %v933, 112
      %v942 = vpop.permute.xlu0 %941
      %vm943 = vcmask 916480
      %v944 = vsel %vm943, %v938, %v940
      %v945 = vsel %vm943, %v940, %v942
      %v947 = vsel %vm536, %v930, 0
      %v950 = vsel %vm540, %v944, 0
      %v953 = vsel %vm540, %v945, 0
      %955 = vmatpush.bf16.msra.mxu0 0
      %956 = vmatpush.bf16.msra.mxu0 0
      %957 = vmatpush.bf16.msra.mxu0 0
      %958 = vmatpush.bf16.msra.mxu0 0
      %959 = vmatpush.bf16.msra.mxu0 0
      %960 = vmatpush.bf16.msra.mxu0 0
      %961 = vmatpush.bf16.msra.mxu0 0
      %962 = vmatpush.bf16.msra.mxu0 %v950
      %963 = vmatmul.bf16.gmra.mxu0 %v947
      %v964 = vpop.f32.mrf.mxu0
      %v965 = vadd.f32 0.0, %v964
      %v966 = vpop.f32.mrf.mxu0
      %967 = vdwg.mxu0
      %968 = vmatpush.bf16.msra.mxu0 0
      %969 = vmatpush.bf16.msra.mxu0 0
      %970 = vmatpush.bf16.msra.mxu0 0
      %971 = vmatpush.bf16.msra.mxu0 0
      %972 = vmatpush.bf16.msra.mxu0 0
      %973 = vmatpush.bf16.msra.mxu0 0
      %974 = vmatpush.bf16.msra.mxu0 0
      %975 = vmatpush.bf16.msra.mxu0 %v953
      %976 = vmatmul.bf16.gmra.mxu0 %v947
      %v977 = vpop.f32.mrf.mxu0
      %v978 = vadd.f32 0.0, %v977
      %v979 = vpop.f32.mrf.mxu0
      %980 = vdwg.mxu0
      %v981 = vadd.f32 %v927, %v965
      %v982 = vadd.f32 %v928, %v978
      %983 = vrot.lane.b32.xlu0 %v621, 17
      %v984 = vpop.permute.xlu0 %983
      %985 = vrot.lane.b32.xlu0 %v622, 17
      %v986 = vpop.permute.xlu0 %985
      %vm987 = vcmask 138240
      %v988 = vsel %vm987, %v984, %v986
      %v992 = vmul.f32 %v794, %v984
      %v993 = vmul.f32 %v795, %v988
      %v994 = vmul.f32 %v796, %v986
      %s995 = scalar_lea.vmem %s5, 16
      %v996 = vld [vmem:[%s995] sm:$0x3]
      %v997 = vpack.c.bf16 %v992, %v992
      %v998 = vpack.c.bf16 %v993, %v993
      %v999 = vpack.c.bf16 %v994, %v994
      %1003 = vrot.lane.b32.xlu0 %v997, 111
      %v1004 = vpop.permute.xlu0 %1003
      %1005 = vrot.lane.b32.xlu0 %v998, 111
      %v1006 = vpop.permute.xlu0 %1005
      %1007 = vrot.lane.b32.xlu0 %v999, 111
      %v1008 = vpop.permute.xlu0 %1007
      %vm1009 = vcmask 908288
      %v1010 = vsel %vm1009, %v1004, %v1006
      %v1011 = vsel %vm1009, %v1006, %v1008
      %v1013 = vsel %vm536, %v996, 0
      %v1016 = vsel %vm540, %v1010, 0
      %v1019 = vsel %vm540, %v1011, 0
      %1021 = vmatpush.bf16.msra.mxu0 0
      %1022 = vmatpush.bf16.msra.mxu0 0
      %1023 = vmatpush.bf16.msra.mxu0 0
      %1024 = vmatpush.bf16.msra.mxu0 0
      %1025 = vmatpush.bf16.msra.mxu0 0
      %1026 = vmatpush.bf16.msra.mxu0 0
      %1027 = vmatpush.bf16.msra.mxu0 0
      %1028 = vmatpush.bf16.msra.mxu0 %v1016
      %1029 = vmatmul.bf16.gmra.mxu0 %v1013
      %v1030 = vpop.f32.mrf.mxu0
      %v1031 = vadd.f32 0.0, %v1030
      %v1032 = vpop.f32.mrf.mxu0
      %1033 = vdwg.mxu0
      %1034 = vmatpush.bf16.msra.mxu0 0
      %1035 = vmatpush.bf16.msra.mxu0 0
      %1036 = vmatpush.bf16.msra.mxu0 0
      %1037 = vmatpush.bf16.msra.mxu0 0
      %1038 = vmatpush.bf16.msra.mxu0 0
      %1039 = vmatpush.bf16.msra.mxu0 0
      %1040 = vmatpush.bf16.msra.mxu0 0
      %1041 = vmatpush.bf16.msra.mxu0 %v1019
      %1042 = vmatmul.bf16.gmra.mxu0 %v1013
      %v1043 = vpop.f32.mrf.mxu0
      %v1044 = vadd.f32 0.0, %v1043
      %v1045 = vpop.f32.mrf.mxu0
      %1046 = vdwg.mxu0
      %v1047 = vadd.f32 %v981, %v1031
      %v1048 = vadd.f32 %v982, %v1044
      %v1049 = vld [vmem:[%s6] sm:$0xf]
      %1051 = vset.pattern.permute.xlu0 0
      %1052 = vperm.xlu0 %1051, %v1049
      %v1053 = vpop.permute.xlu0 %1052
      %v1055 = vadd.f32 %v1047, %v1053
      %v1056 = vadd.f32 %v1048, %v1053
      %vm1057 = vcmp.ge.f32.partialorder %v1055, 0.0
      %vm1058 = vcmp.ge.f32.partialorder %v1056, 0.0
      %v1059 = vld [vmem:[%s7] sm:$0xf]
      %1061 = vset.pattern.permute.xlu0 0
      %1062 = vperm.xlu0 %1061, %v1059
      %v1063 = vpop.permute.xlu0 %1062
      %v1065 = vmul.f32 %v1055, %v1063
      %v1066 = vmul.f32 %v1056, %v1063
      %v1067 = vsel %vm1057, %v1055, %v1065
      %v1068 = vsel %vm1058, %v1056, %v1066
      %v1071 = vrot.slane %v1068, 4
      %v1072 = vsel %vm540, %v1067, %v1071
      %1074 = vst [vmem:[#allocation3 + $0x4] sm:$0xff] %v1072
      %v1075 = vld [vmem:[#allocation3] sm:$0xff]
      %v1076 = vld [vmem:[#allocation3 + $0x8] sm:$0xf]
      %v1077 = vrot.slane %v502, 4
      %v1078 = vsel %vm540, %v501, %v1077
      %1079 = vrot.lane.b32.xlu0 %v1078, 111
      %v1080 = vpop.permute.xlu0 %1079
      %v1081 = vrot.slane %v1080, 4
      %v1082 = vsel %vm507, %v1081, %v1080
      %v1085 = vmul.f32 %v1075, %v1082
      %v1086 = vmul.f32 %v1076, %v1081
      %v1087 = vld [vmem:[%s8] sm:$0x3]
      %1090 = vst [vmem:[#allocation1] ss:$2 sm:$0xff] %v1085
      %s1091 = scalar_lea.vmem [#allocation1], 16
      %1092 = vst [vmem:[%s1091] ss:$2 sm:$0xff] %v1086
      %v1093 = vld.sshfl [vmem:[#allocation1] sm:$0xff pattern:$0x75316420]
      %v1094 = vld.sshfl [vmem:[#allocation1 + $0x8] sm:$0xff pattern:$0x75316420]
      %v1095 = vld.sshfl [vmem:[#allocation1 + $0x10] sm:$0xff pattern:$0x75316420]
      %v1099 = vpack.c.bf16 %v1093, %v1093
      %v1100 = vpack.c.bf16 %v1094, %v1094
      %v1101 = vpack.c.bf16 %v1095, %v1095
      %v1102 = vld [vmem:[#allocation3] sm:$0xff]
      %v1103 = vld [vmem:[#allocation3 + $0x8] sm:$0xf]
      %s1104 = scalar_lea.vmem %s8, 2
      %v1105 = vld [vmem:[%s1104] sm:$0x3]
      %1108 = vst [vmem:[#allocation1] ss:$2 sm:$0xff] %v1102
      %s1109 = scalar_lea.vmem [#allocation1], 16
      %1110 = vst [vmem:[%s1109] ss:$2 sm:$0xff] %v1103
      %v1111 = vld.sshfl [vmem:[#allocation1] sm:$0xff pattern:$0x75316420]
      %v1112 = vld.sshfl [vmem:[#allocation1 + $0x8] sm:$0xff pattern:$0x75316420]
      %v1113 = vld.sshfl [vmem:[#allocation1 + $0x10] sm:$0xff pattern:$0x75316420]
      %v1117 = vpack.c.bf16 %v1111, %v1111
      %v1118 = vpack.c.bf16 %v1112, %v1112
      %v1119 = vpack.c.bf16 %v1113, %v1113
      %1123 = vrot.lane.b32.xlu0 %v1117, 16
      %v1124 = vpop.permute.xlu0 %1123
      %1125 = vrot.lane.b32.xlu0 %v1118, 16
      %v1126 = vpop.permute.xlu0 %1125
      %1127 = vrot.lane.b32.xlu0 %v1119, 16
      %v1128 = vpop.permute.xlu0 %1127
      %v1129 = vsel %vm533, %v1124, %v1126
      %v1130 = vsel %vm533, %v1126, %v1128
      %vm1131 = vcmask 31744
      %v1133 = vsel %vm1131, %v1105, 0
      %vm1135 = vcmask 1041408
      %v1137 = vsel %vm1135, %v1129, 0
      %v1140 = vsel %vm1135, %v1130, 0
      %1142 = vmatpush.bf16.msra.mxu0 0
      %1143 = vmatpush.bf16.msra.mxu0 0
      %1144 = vmatpush.bf16.msra.mxu0 0
      %1145 = vmatpush.bf16.msra.mxu0 0
      %1146 = vmatpush.bf16.msra.mxu0 0
      %1147 = vmatpush.bf16.msra.mxu0 0
      %1148 = vmatpush.bf16.msra.mxu0 0
      %1149 = vmatpush.bf16.msra.mxu0 %v1137
      %1150 = vmatmul.bf16.gmra.mxu0 %v1133
      %v1151 = vpop.f32.mrf.mxu0
      %v1152 = vadd.f32 0.0, %v1151
      %v1153 = vpop.f32.mrf.mxu0
      %1154 = vdwg.mxu0
      %1155 = vmatpush.bf16.msra.mxu0 0
      %1156 = vmatpush.bf16.msra.mxu0 0
      %1157 = vmatpush.bf16.msra.mxu0 0
      %1158 = vmatpush.bf16.msra.mxu0 0
      %1159 = vmatpush.bf16.msra.mxu0 0
      %1160 = vmatpush.bf16.msra.mxu0 0
      %1161 = vmatpush.bf16.msra.mxu0 0
      %1162 = vmatpush.bf16.msra.mxu0 %v1140
      %1163 = vmatmul.bf16.gmra.mxu0 %v1133
      %v1164 = vpop.f32.mrf.mxu0
      %v1165 = vadd.f32 0.0, %v1164
      %v1166 = vpop.f32.mrf.mxu0
      %1167 = vdwg.mxu0
      %1171 = vrot.lane.b32.xlu0 %v1099, 17
      %v1172 = vpop.permute.xlu0 %1171
      %1173 = vrot.lane.b32.xlu0 %v1100, 17
      %v1174 = vpop.permute.xlu0 %1173
      %1175 = vrot.lane.b32.xlu0 %v1101, 17
      %v1176 = vpop.permute.xlu0 %1175
      %v1177 = vsel %vm582, %v1172, %v1174
      %v1178 = vsel %vm582, %v1174, %v1176
      %v1180 = vsel %vm1131, %v1087, 0
      %v1183 = vsel %vm1135, %v1177, 0
      %v1186 = vsel %vm1135, %v1178, 0
      %1188 = vmatpush.bf16.msra.mxu0 0
      %1189 = vmatpush.bf16.msra.mxu0 0
      %1190 = vmatpush.bf16.msra.mxu0 0
      %1191 = vmatpush.bf16.msra.mxu0 0
      %1192 = vmatpush.bf16.msra.mxu0 0
      %1193 = vmatpush.bf16.msra.mxu0 0
      %1194 = vmatpush.bf16.msra.mxu0 0
      %1195 = vmatpush.bf16.msra.mxu0 %v1183
      %1196 = vmatmul.bf16.gmra.mxu0 %v1180
      %v1197 = vpop.f32.mrf.mxu0
      %v1198 = vadd.f32 %v1152, %v1197
      %v1199 = vpop.f32.mrf.mxu0
      %1200 = vdwg.mxu0
      %1201 = vmatpush.bf16.msra.mxu0 0
      %1202 = vmatpush.bf16.msra.mxu0 0
      %1203 = vmatpush.bf16.msra.mxu0 0
      %1204 = vmatpush.bf16.msra.mxu0 0
      %1205 = vmatpush.bf16.msra.mxu0 0
      %1206 = vmatpush.bf16.msra.mxu0 0
      %1207 = vmatpush.bf16.msra.mxu0 0
      %1208 = vmatpush.bf16.msra.mxu0 %v1186
      %1209 = vmatmul.bf16.gmra.mxu0 %v1180
      %v1210 = vpop.f32.mrf.mxu0
      %v1211 = vadd.f32 %v1165, %v1210
      %v1212 = vpop.f32.mrf.mxu0
      %1213 = vdwg.mxu0
      %v1214 = vld [vmem:[#allocation3] sm:$0xff]
      %v1215 = vld [vmem:[#allocation3 + $0x8] sm:$0xf]
      %v1216 = vrot.slane %v622, 4
      %v1217 = vsel %vm540, %v621, %v1216
      %1218 = vrot.lane.b32.xlu0 %v1217, 113
      %v1219 = vpop.permute.xlu0 %1218
      %v1220 = vrot.slane %v1219, 4
      %v1221 = vsel %vm627, %v1220, %v1219
      %v1224 = vmul.f32 %v1214, %v1221
      %v1225 = vmul.f32 %v1215, %v1220
      %s1226 = scalar_lea.vmem %s8, 4
      %v1227 = vld [vmem:[%s1226] sm:$0x3]
      %1230 = vst [vmem:[#allocation1] ss:$2 sm:$0xff] %v1224
      %s1231 = scalar_lea.vmem [#allocation1], 16
      %1232 = vst [vmem:[%s1231] ss:$2 sm:$0xff] %v1225
      %v1233 = vld.sshfl [vmem:[#allocation1] sm:$0xff pattern:$0x75316420]
      %v1234 = vld.sshfl [vmem:[#allocation1 + $0x8] sm:$0xff pattern:$0x75316420]
      %v1235 = vld.sshfl [vmem:[#allocation1 + $0x10] sm:$0xff pattern:$0x75316420]
      %v1239 = vpack.c.bf16 %v1233, %v1233
      %v1240 = vpack.c.bf16 %v1234, %v1234
      %v1241 = vpack.c.bf16 %v1235, %v1235
      %1245 = vrot.lane.b32.xlu0 %v1239, 15
      %v1246 = vpop.permute.xlu0 %1245
      %1247 = vrot.lane.b32.xlu0 %v1240, 15
      %v1248 = vpop.permute.xlu0 %1247
      %1249 = vrot.lane.b32.xlu0 %v1241, 15
      %v1250 = vpop.permute.xlu0 %1249
      %v1251 = vsel %vm649, %v1246, %v1248
      %v1252 = vsel %vm649, %v1248, %v1250
      %v1254 = vsel %vm1131, %v1227, 0
      %v1257 = vsel %vm1135, %v1251, 0
      %v1260 = vsel %vm1135, %v1252, 0
      %1262 = vmatpush.bf16.msra.mxu0 0
      %1263 = vmatpush.bf16.msra.mxu0 0
      %1264 = vmatpush.bf16.msra.mxu0 0
      %1265 = vmatpush.bf16.msra.mxu0 0
      %1266 = vmatpush.bf16.msra.mxu0 0
      %1267 = vmatpush.bf16.msra.mxu0 0
      %1268 = vmatpush.bf16.msra.mxu0 0
      %1269 = vmatpush.bf16.msra.mxu0 %v1257
      %1270 = vmatmul.bf16.gmra.mxu0 %v1254
      %v1271 = vpop.f32.mrf.mxu0
      %v1272 = vadd.f32 0.0, %v1271
      %v1273 = vpop.f32.mrf.mxu0
      %1274 = vdwg.mxu0
      %1275 = vmatpush.bf16.msra.mxu0 0
      %1276 = vmatpush.bf16.msra.mxu0 0
      %1277 = vmatpush.bf16.msra.mxu0 0
      %1278 = vmatpush.bf16.msra.mxu0 0
      %1279 = vmatpush.bf16.msra.mxu0 0
      %1280 = vmatpush.bf16.msra.mxu0 0
      %1281 = vmatpush.bf16.msra.mxu0 0
      %1282 = vmatpush.bf16.msra.mxu0 %v1260
      %1283 = vmatmul.bf16.gmra.mxu0 %v1254
      %v1284 = vpop.f32.mrf.mxu0
      %v1285 = vadd.f32 0.0, %v1284
      %v1286 = vpop.f32.mrf.mxu0
      %1287 = vdwg.mxu0
      %v1288 = vadd.f32 %v1198, %v1272
      %v1289 = vadd.f32 %v1211, %v1285
      %v1290 = vld [vmem:[#allocation3] sm:$0xff]
      %v1291 = vld [vmem:[#allocation3 + $0x8] sm:$0xf]
      %1292 = vrot.lane.b32.xlu0 %v1078, 127
      %v1293 = vpop.permute.xlu0 %1292
      %v1294 = vrot.slane %v1293, 4
      %v1295 = vsel %vm693, %v1294, %v1293
      %v1298 = vmul.f32 %v1290, %v1295
      %v1299 = vmul.f32 %v1291, %v1294
      %s1300 = scalar_lea.vmem %s8, 6
      %v1301 = vld [vmem:[%s1300] sm:$0x3]
      %1304 = vst [vmem:[#allocation1] ss:$2 sm:$0xff] %v1298
      %s1305 = scalar_lea.vmem [#allocation1], 16
      %1306 = vst [vmem:[%s1305] ss:$2 sm:$0xff] %v1299
      %v1307 = vld.sshfl [vmem:[#allocation1] sm:$0xff pattern:$0x75316420]
      %v1308 = vld.sshfl [vmem:[#allocation1 + $0x8] sm:$0xff pattern:$0x75316420]
      %v1309 = vld.sshfl [vmem:[#allocation1 + $0x10] sm:$0xff pattern:$0x75316420]
      %v1313 = vpack.c.bf16 %v1307, %v1307
      %v1314 = vpack.c.bf16 %v1308, %v1308
      %v1315 = vpack.c.bf16 %v1309, %v1309
      %1319 = vrot.lane.b32.xlu0 %v1313, 1
      %v1320 = vpop.permute.xlu0 %1319
      %1321 = vrot.lane.b32.xlu0 %v1314, 1
      %v1322 = vpop.permute.xlu0 %1321
      %1323 = vrot.lane.b32.xlu0 %v1315, 1
      %v1324 = vpop.permute.xlu0 %1323
      %v1325 = vsel %vm715, %v1320, %v1322
      %v1326 = vsel %vm715, %v1322, %v1324
      %v1328 = vsel %vm1131, %v1301, 0
      %v1331 = vsel %vm1135, %v1325, 0
      %v1334 = vsel %vm1135, %v1326, 0
      %1336 = vmatpush.bf16.msra.mxu0 0
      %1337 = vmatpush.bf16.msra.mxu0 0
      %1338 = vmatpush.bf16.msra.mxu0 0
      %1339 = vmatpush.bf16.msra.mxu0 0
      %1340 = vmatpush.bf16.msra.mxu0 0
      %1341 = vmatpush.bf16.msra.mxu0 0
      %1342 = vmatpush.bf16.msra.mxu0 0
      %1343 = vmatpush.bf16.msra.mxu0 %v1331
      %1344 = vmatmul.bf16.gmra.mxu0 %v1328
      %v1345 = vpop.f32.mrf.mxu0
      %v1346 = vadd.f32 0.0, %v1345
      %v1347 = vpop.f32.mrf.mxu0
      %1348 = vdwg.mxu0
      %1349 = vmatpush.bf16.msra.mxu0 0
      %1350 = vmatpush.bf16.msra.mxu0 0
      %1351 = vmatpush.bf16.msra.mxu0 0
      %1352 = vmatpush.bf16.msra.mxu0 0
      %1353 = vmatpush.bf16.msra.mxu0 0
      %1354 = vmatpush.bf16.msra.mxu0 0
      %1355 = vmatpush.bf16.msra.mxu0 0
      %1356 = vmatpush.bf16.msra.mxu0 %v1334
      %1357 = vmatmul.bf16.gmra.mxu0 %v1328
      %v1358 = vpop.f32.mrf.mxu0
      %v1359 = vadd.f32 0.0, %v1358
      %v1360 = vpop.f32.mrf.mxu0
      %1361 = vdwg.mxu0
      %v1362 = vadd.f32 %v1288, %v1346
      %v1363 = vadd.f32 %v1289, %v1359
      %v1364 = vld [vmem:[#allocation3 + $0x4] sm:$0xff]
      %s1365 = scalar_lea.vmem %s8, 8
      %v1366 = vld [vmem:[%s1365] sm:$0x3]
      %1368 = vst [vmem:[#allocation1] ss:$2 sm:$0xff] %v1364
      %v1369 = vld.sshfl [vmem:[#allocation1] sm:$0xff pattern:$0x75316420]
      %v1370 = vld.sshfl [vmem:[#allocation1 + $0x8] sm:$0xff pattern:$0x75316420]
      %v1373 = vpack.c.bf16 %v1369, %v1369
      %v1374 = vpack.c.bf16 %v1370, %v1370
      %v1376 = vsel %vm1131, %v1366, 0
      %v1379 = vsel %vm1135, %v1373, 0
      %v1382 = vsel %vm1135, %v1374, 0
      %1384 = vmatpush.bf16.msra.mxu0 0
      %1385 = vmatpush.bf16.msra.mxu0 0
      %1386 = vmatpush.bf16.msra.mxu0 0
      %1387 = vmatpush.bf16.msra.mxu0 0
      %1388 = vmatpush.bf16.msra.mxu0 0
      %1389 = vmatpush.bf16.msra.mxu0 0
      %1390 = vmatpush.bf16.msra.mxu0 0
      %1391 = vmatpush.bf16.msra.mxu0 %v1379
      %1392 = vmatmul.bf16.gmra.mxu0 %v1376
      %v1393 = vpop.f32.mrf.mxu0
      %v1394 = vadd.f32 0.0, %v1393
      %v1395 = vpop.f32.mrf.mxu0
      %1396 = vdwg.mxu0
      %1397 = vmatpush.bf16.msra.mxu0 0
      %1398 = vmatpush.bf16.msra.mxu0 0
      %1399 = vmatpush.bf16.msra.mxu0 0
      %1400 = vmatpush.bf16.msra.mxu0 0
      %1401 = vmatpush.bf16.msra.mxu0 0
      %1402 = vmatpush.bf16.msra.mxu0 0
      %1403 = vmatpush.bf16.msra.mxu0 0
      %1404 = vmatpush.bf16.msra.mxu0 %v1382
      %1405 = vmatmul.bf16.gmra.mxu0 %v1376
      %v1406 = vpop.f32.mrf.mxu0
      %v1407 = vadd.f32 0.0, %v1406
      %v1408 = vpop.f32.mrf.mxu0
      %1409 = vdwg.mxu0
      %v1410 = vadd.f32 %v1362, %v1394
      %v1411 = vadd.f32 %v1363, %v1407
      %v1412 = vld [vmem:[#allocation3 + $0x4] sm:$0xff]
      %v1413 = vld [vmem:[#allocation3 + $0xc] sm:$0xf]
      %1414 = vrot.lane.b32.xlu0 %v1217, 1
      %v1415 = vpop.permute.xlu0 %1414
      %v1416 = vrot.slane %v1415, 4
      %v1417 = vsel %vm801, %v1416, %v1415
      %v1420 = vmul.f32 %v1412, %v1417
      %v1421 = vmul.f32 %v1413, %v1416
      %s1422 = scalar_lea.vmem %s8, 10
      %v1423 = vld [vmem:[%s1422] sm:$0x3]
      %1426 = vst [vmem:[#allocation1] ss:$2 sm:$0xff] %v1420
      %s1427 = scalar_lea.vmem [#allocation1], 16
      %1428 = vst [vmem:[%s1427] ss:$2 sm:$0xff] %v1421
      %v1429 = vld.sshfl [vmem:[#allocation1] sm:$0xff pattern:$0x75316420]
      %v1430 = vld.sshfl [vmem:[#allocation1 + $0x8] sm:$0xff pattern:$0x75316420]
      %v1431 = vld.sshfl [vmem:[#allocation1 + $0x10] sm:$0xff pattern:$0x75316420]
      %v1435 = vpack.c.bf16 %v1429, %v1429
      %v1436 = vpack.c.bf16 %v1430, %v1430
      %v1437 = vpack.c.bf16 %v1431, %v1431
      %1441 = vrot.lane.b32.xlu0 %v1435, 127
      %v1442 = vpop.permute.xlu0 %1441
      %1443 = vrot.lane.b32.xlu0 %v1436, 127
      %v1444 = vpop.permute.xlu0 %1443
      %1445 = vrot.lane.b32.xlu0 %v1437, 127
      %v1446 = vpop.permute.xlu0 %1445
      %v1447 = vsel %vm823, %v1442, %v1444
      %v1448 = vsel %vm823, %v1444, %v1446
      %v1450 = vsel %vm1131, %v1423, 0
      %v1453 = vsel %vm1135, %v1447, 0
      %v1456 = vsel %vm1135, %v1448, 0
      %1458 = vmatpush.bf16.msra.mxu0 0
      %1459 = vmatpush.bf16.msra.mxu0 0
      %1460 = vmatpush.bf16.msra.mxu0 0
      %1461 = vmatpush.bf16.msra.mxu0 0
      %1462 = vmatpush.bf16.msra.mxu0 0
      %1463 = vmatpush.bf16.msra.mxu0 0
      %1464 = vmatpush.bf16.msra.mxu0 0
      %1465 = vmatpush.bf16.msra.mxu0 %v1453
      %1466 = vmatmul.bf16.gmra.mxu0 %v1450
      %v1467 = vpop.f32.mrf.mxu0
      %v1468 = vadd.f32 0.0, %v1467
      %v1469 = vpop.f32.mrf.mxu0
      %1470 = vdwg.mxu0
      %1471 = vmatpush.bf16.msra.mxu0 0
      %1472 = vmatpush.bf16.msra.mxu0 0
      %1473 = vmatpush.bf16.msra.mxu0 0
      %1474 = vmatpush.bf16.msra.mxu0 0
      %1475 = vmatpush.bf16.msra.mxu0 0
      %1476 = vmatpush.bf16.msra.mxu0 0
      %1477 = vmatpush.bf16.msra.mxu0 0
      %1478 = vmatpush.bf16.msra.mxu0 %v1456
      %1479 = vmatmul.bf16.gmra.mxu0 %v1450
      %v1480 = vpop.f32.mrf.mxu0
      %v1481 = vadd.f32 0.0, %v1480
      %v1482 = vpop.f32.mrf.mxu0
      %1483 = vdwg.mxu0
      %v1484 = vadd.f32 %v1410, %v1468
      %v1485 = vadd.f32 %v1411, %v1481
      %v1486 = vld [vmem:[#allocation3 + $0x4] sm:$0xff]
      %v1487 = vld [vmem:[#allocation3 + $0xc] sm:$0xf]
      %1488 = vrot.lane.b32.xlu0 %v1078, 15
      %v1489 = vpop.permute.xlu0 %1488
      %v1490 = vrot.slane %v1489, 4
      %v1491 = vsel %vm867, %v1490, %v1489
      %v1494 = vmul.f32 %v1486, %v1491
      %v1495 = vmul.f32 %v1487, %v1490
      %s1496 = scalar_lea.vmem %s8, 12
      %v1497 = vld [vmem:[%s1496] sm:$0x3]
      %1500 = vst [vmem:[#allocation1] ss:$2 sm:$0xff] %v1494
      %s1501 = scalar_lea.vmem [#allocation1], 16
      %1502 = vst [vmem:[%s1501] ss:$2 sm:$0xff] %v1495
      %v1503 = vld.sshfl [vmem:[#allocation1] sm:$0xff pattern:$0x75316420]
      %v1504 = vld.sshfl [vmem:[#allocation1 + $0x8] sm:$0xff pattern:$0x75316420]
      %v1505 = vld.sshfl [vmem:[#allocation1 + $0x10] sm:$0xff pattern:$0x75316420]
      %v1509 = vpack.c.bf16 %v1503, %v1503
      %v1510 = vpack.c.bf16 %v1504, %v1504
      %v1511 = vpack.c.bf16 %v1505, %v1505
      %1515 = vrot.lane.b32.xlu0 %v1509, 113
      %v1516 = vpop.permute.xlu0 %1515
      %1517 = vrot.lane.b32.xlu0 %v1510, 113
      %v1518 = vpop.permute.xlu0 %1517
      %1519 = vrot.lane.b32.xlu0 %v1511, 113
      %v1520 = vpop.permute.xlu0 %1519
      %v1521 = vsel %vm889, %v1516, %v1518
      %v1522 = vsel %vm889, %v1518, %v1520
      %v1524 = vsel %vm1131, %v1497, 0
      %v1527 = vsel %vm1135, %v1521, 0
      %v1530 = vsel %vm1135, %v1522, 0
      %1532 = vmatpush.bf16.msra.mxu0 0
      %1533 = vmatpush.bf16.msra.mxu0 0
      %1534 = vmatpush.bf16.msra.mxu0 0
      %1535 = vmatpush.bf16.msra.mxu0 0
      %1536 = vmatpush.bf16.msra.mxu0 0
      %1537 = vmatpush.bf16.msra.mxu0 0
      %1538 = vmatpush.bf16.msra.mxu0 0
      %1539 = vmatpush.bf16.msra.mxu0 %v1527
      %1540 = vmatmul.bf16.gmra.mxu0 %v1524
      %v1541 = vpop.f32.mrf.mxu0
      %v1542 = vadd.f32 0.0, %v1541
      %v1543 = vpop.f32.mrf.mxu0
      %1544 = vdwg.mxu0
      %1545 = vmatpush.bf16.msra.mxu0 0
      %1546 = vmatpush.bf16.msra.mxu0 0
      %1547 = vmatpush.bf16.msra.mxu0 0
      %1548 = vmatpush.bf16.msra.mxu0 0
      %1549 = vmatpush.bf16.msra.mxu0 0
      %1550 = vmatpush.bf16.msra.mxu0 0
      %1551 = vmatpush.bf16.msra.mxu0 0
      %1552 = vmatpush.bf16.msra.mxu0 %v1530
      %1553 = vmatmul.bf16.gmra.mxu0 %v1524
      %v1554 = vpop.f32.mrf.mxu0
      %v1555 = vadd.f32 0.0, %v1554
      %v1556 = vpop.f32.mrf.mxu0
      %1557 = vdwg.mxu0
      %v1558 = vadd.f32 %v1484, %v1542
      %v1559 = vadd.f32 %v1485, %v1555
      %v1560 = vld [vmem:[#allocation3 + $0x4] sm:$0xff]
      %v1561 = vld [vmem:[#allocation3 + $0xc] sm:$0xf]
      %s1562 = scalar_lea.vmem %s8, 14
      %v1563 = vld [vmem:[%s1562] sm:$0x3]
      %1566 = vst [vmem:[#allocation1] ss:$2 sm:$0xff] %v1560
      %s1567 = scalar_lea.vmem [#allocation1], 16
      %1568 = vst [vmem:[%s1567] ss:$2 sm:$0xff] %v1561
      %v1569 = vld.sshfl [vmem:[#allocation1] sm:$0xff pattern:$0x75316420]
      %v1570 = vld.sshfl [vmem:[#allocation1 + $0x8] sm:$0xff pattern:$0x75316420]
      %v1571 = vld.sshfl [vmem:[#allocation1 + $0x10] sm:$0xff pattern:$0x75316420]
      %v1575 = vpack.c.bf16 %v1569, %v1569
      %v1576 = vpack.c.bf16 %v1570, %v1570
      %v1577 = vpack.c.bf16 %v1571, %v1571
      %1581 = vrot.lane.b32.xlu0 %v1575, 112
      %v1582 = vpop.permute.xlu0 %1581
      %1583 = vrot.lane.b32.xlu0 %v1576, 112
      %v1584 = vpop.permute.xlu0 %1583
      %1585 = vrot.lane.b32.xlu0 %v1577, 112
      %v1586 = vpop.permute.xlu0 %1585
      %v1587 = vsel %vm943, %v1582, %v1584
      %v1588 = vsel %vm943, %v1584, %v1586
      %v1590 = vsel %vm1131, %v1563, 0
      %v1593 = vsel %vm1135, %v1587, 0
      %v1596 = vsel %vm1135, %v1588, 0
      %1598 = vmatpush.bf16.msra.mxu0 0
      %1599 = vmatpush.bf16.msra.mxu0 0
      %1600 = vmatpush.bf16.msra.mxu0 0
      %1601 = vmatpush.bf16.msra.mxu0 0
      %1602 = vmatpush.bf16.msra.mxu0 0
      %1603 = vmatpush.bf16.msra.mxu0 0
      %1604 = vmatpush.bf16.msra.mxu0 0
      %1605 = vmatpush.bf16.msra.mxu0 %v1593
      %1606 = vmatmul.bf16.gmra.mxu0 %v1590
      %v1607 = vpop.f32.mrf.mxu0
      %v1608 = vadd.f32 0.0, %v1607
      %v1609 = vpop.f32.mrf.mxu0
      %1610 = vdwg.mxu0
      %1611 = vmatpush.bf16.msra.mxu0 0
      %1612 = vmatpush.bf16.msra.mxu0 0
      %1613 = vmatpush.bf16.msra.mxu0 0
      %1614 = vmatpush.bf16.msra.mxu0 0
      %1615 = vmatpush.bf16.msra.mxu0 0
      %1616 = vmatpush.bf16.msra.mxu0 0
      %1617 = vmatpush.bf16.msra.mxu0 0
      %1618 = vmatpush.bf16.msra.mxu0 %v1596
      %1619 = vmatmul.bf16.gmra.mxu0 %v1590
      %v1620 = vpop.f32.mrf.mxu0
      %v1621 = vadd.f32 0.0, %v1620
      %v1622 = vpop.f32.mrf.mxu0
      %1623 = vdwg.mxu0
      %v1624 = vadd.f32 %v1558, %v1608
      %v1625 = vadd.f32 %v1559, %v1621
      %v1626 = vld [vmem:[#allocation3 + $0x4] sm:$0xff]
      %v1627 = vld [vmem:[#allocation3 + $0xc] sm:$0xf]
      %1628 = vrot.lane.b32.xlu0 %v1217, 17
      %v1629 = vpop.permute.xlu0 %1628
      %v1630 = vrot.slane %v1629, 4
      %v1631 = vsel %vm987, %v1630, %v1629
      %v1634 = vmul.f32 %v1626, %v1631
      %v1635 = vmul.f32 %v1627, %v1630
      %s1636 = scalar_lea.vmem %s8, 16
      %v1637 = vld [vmem:[%s1636] sm:$0x3]
      %1640 = vst [vmem:[#allocation1] ss:$2 sm:$0xff] %v1634
      %s1641 = scalar_lea.vmem [#allocation1], 16
      %1642 = vst [vmem:[%s1641] ss:$2 sm:$0xff] %v1635
      %v1643 = vld.sshfl [vmem:[#allocation1] sm:$0xff pattern:$0x75316420]
      %v1644 = vld.sshfl [vmem:[#allocation1 + $0x8] sm:$0xff pattern:$0x75316420]
      %v1645 = vld.sshfl [vmem:[#allocation1 + $0x10] sm:$0xff pattern:$0x75316420]
      %v1649 = vpack.c.bf16 %v1643, %v1643
      %v1650 = vpack.c.bf16 %v1644, %v1644
      %v1651 = vpack.c.bf16 %v1645, %v1645
      %1655 = vrot.lane.b32.xlu0 %v1649, 111
      %v1656 = vpop.permute.xlu0 %1655
      %1657 = vrot.lane.b32.xlu0 %v1650, 111
      %v1658 = vpop.permute.xlu0 %1657
      %1659 = vrot.lane.b32.xlu0 %v1651, 111
      %v1660 = vpop.permute.xlu0 %1659
      %v1661 = vsel %vm1009, %v1656, %v1658
      %v1662 = vsel %vm1009, %v1658, %v1660
      %v1664 = vsel %vm1131, %v1637, 0
      %v1667 = vsel %vm1135, %v1661, 0
      %v1670 = vsel %vm1135, %v1662, 0
      %1672 = vmatpush.bf16.msra.mxu0 0
      %1673 = vmatpush.bf16.msra.mxu0 0
      %1674 = vmatpush.bf16.msra.mxu0 0
      %1675 = vmatpush.bf16.msra.mxu0 0
      %1676 = vmatpush.bf16.msra.mxu0 0
      %1677 = vmatpush.bf16.msra.mxu0 0
      %1678 = vmatpush.bf16.msra.mxu0 0
      %1679 = vmatpush.bf16.msra.mxu0 %v1667
      %1680 = vmatmul.bf16.gmra.mxu0 %v1664
      %v1681 = vpop.f32.mrf.mxu0
      %v1682 = vadd.f32 0.0, %v1681
      %v1683 = vpop.f32.mrf.mxu0
      %1684 = vdwg.mxu0
      %1685 = vmatpush.bf16.msra.mxu0 0
      %1686 = vmatpush.bf16.msra.mxu0 0
      %1687 = vmatpush.bf16.msra.mxu0 0
      %1688 = vmatpush.bf16.msra.mxu0 0
      %1689 = vmatpush.bf16.msra.mxu0 0
      %1690 = vmatpush.bf16.msra.mxu0 0
      %1691 = vmatpush.bf16.msra.mxu0 0
      %1692 = vmatpush.bf16.msra.mxu0 %v1670
      %1693 = vmatmul.bf16.gmra.mxu0 %v1664
      %v1694 = vpop.f32.mrf.mxu0
      %v1695 = vadd.f32 0.0, %v1694
      %v1696 = vpop.f32.mrf.mxu0
      %1697 = vdwg.mxu0
      %v1698 = vadd.f32 %v1624, %v1682
      %v1699 = vadd.f32 %v1625, %v1695
      %v1700 = vld [vmem:[%s9] sm:$0xf]
      %1702 = vset.pattern.permute.xlu0 0
      %1703 = vperm.xlu0 %1702, %v1700
      %v1704 = vpop.permute.xlu0 %1703
      %v1706 = vadd.f32 %v1698, %v1704
      %v1707 = vadd.f32 %v1699, %v1704
      %vm1708 = vcmp.ge.f32.partialorder %v1706, 0.0
      %vm1709 = vcmp.ge.f32.partialorder %v1707, 0.0
      %v1710 = vld [vmem:[%s10] sm:$0xf]
      %1712 = vset.pattern.permute.xlu0 0
      %1713 = vperm.xlu0 %1712, %v1710
      %v1714 = vpop.permute.xlu0 %1713
      %v1716 = vmul.f32 %v1706, %v1714
      %v1717 = vmul.f32 %v1707, %v1714
      %v1718 = vsel %vm1708, %v1706, %v1716
      %v1719 = vsel %vm1709, %v1707, %v1717
      %v1722 = vrot.slane %v1719, 4
      %v1723 = vsel %vm540, %v1718, %v1722
      %1725 = vst [vmem:[%s433] sm:$0xff] %v1723
      %p1726 = scmp.lt.s32.totalorder %s23, 1
      %s1727 = scalar_select %p1726, %s23, 1
      %s1728 = smul.addr %s1727, 2
      %s1729 = smul.addr %s1728, 4
      %s1730 = scalar_lea.vmem %s12, %s1729
      // Predicated region
      $region69: #{decoder_block_forward.3} parent=67 // pred_check
        %p1731 = pneg %p303
      $region70: #{decoder_block_forward.3} parent=67 // pred_check_branch
        %1733 = sbr.rel (%p1731) target = $region72
      $region71: #{decoder_block_forward.3} parent=67 // pred_region
        _
      $region72: #{decoder_block_forward.3} parent=67 // pred_fallthru
        _
    $region68: #{decoder_block_forward.3} parent=5 // pred_fallthru
      _
    %p1734 = scmp.le.s32.totalorder 2, %s18
    // Predicated region
    $region73: #{decoder_block_forward.3} parent=5 // pred_check
      %p1735 = pneg %p1734
    $region74: #{decoder_block_forward.3} parent=5 // pred_check_branch
      %1737 = sbr.rel (%p1735) target = $region76
    $region75: #{decoder_block_forward.3} parent=5 // pred_region
      %s1738 = ssub.s32 %s18, 2
      // Predicated region
      $region77: #{decoder_block_forward.3} parent=75 // pred_check
        %p1739 = pneg %p309
      $region78: #{decoder_block_forward.3} parent=75 // pred_check_branch
        %1741 = sbr.rel (%p1739) target = $region80
      $region79: #{decoder_block_forward.3} parent=75 // pred_region
        %p1742 = scmp.lt.s32.totalorder %s24, 1
        %s1743 = scalar_select %p1742, %s24, 1
        %s1744 = smul.addr %s1743, 2
        %s1745 = smul.addr %s1744, 4
        %s1746 = scalar_lea.vmem %s12, %s1745
      $region80: #{decoder_block_forward.3} parent=75 // pred_fallthru
        _
    $region76: #{decoder_block_forward.3} parent=5 // pred_fallthru
      _
  $region6: #{decoder_block_forward.3} parent=0 // loop_footer
    %s22 = sadd.s32 1, %s18
  $region7: #{decoder_block_forward.3} parent=0 // loop_footer_branch
    %17 = sbr.rel target = $region3
  $region8: #{decoder_block_forward.3} parent=0 // loop_exit
    _

</llo_original>
